<compile_context>
chip_gen: v6e
topology: v6e:2x2x1
jax: 0.10.0
libtpu: 0.0.40
codegen_flags: <defaults>
</compile_context>

<pallas_src>
import functools

import jax
import jax.numpy as jnp
from jax import lax
from jax.experimental import pallas as pl
from jax.experimental.pallas import tpu as pltpu


# ----------------------------------------------------------------------------
# Kernel: whole residual stack for a block of Nblk images.
# ----------------------------------------------------------------------------
def _residual_stack_kernel(x_ref, b3_ref, w1_ref, out_ref, *, H, num_layers):
  # x_ref   : (Nblk*H, W*Cin)           activations, lane-dense (row = image row)
  # b3_ref  : (L, 3, W*Cin, W*Chid)     banded 3x3 conv weights (bf16), one per dy
  # w1_ref  : (L, W*Chid, W*Cout)       block-diagonal 1x1 conv weights (bf16)
  # out_ref : (Nblk*H, W*Cout)
  M = x_ref.shape[0]

  # Row-within-image index; hoisted out of the layer loop (loop-invariant).
  h_idx = lax.broadcasted_iota(jnp.int32, (M, 1), 0) % H
  not_top = h_idx != 0            # rows that have a valid row above them
  not_bot = h_idx != (H - 1)      # rows that have a valid row below them

  act = x_ref[...].astype(jnp.float32)                    # (M, W*Cin) f32

  for l in range(num_layers):     # static unroll (fine for small L)
    # ReLU in f32, cast operands to bf16 for the MXU.
    r = jnp.maximum(act, 0.0).astype(b3_ref.dtype)

    # 3x3 conv == three banded matmuls (horizontal halo folded into weights),
    # f32 accumulation on the MXU.
    y_top = jnp.dot(r, b3_ref[l, 0], preferred_element_type=jnp.float32)
    y_mid = jnp.dot(r, b3_ref[l, 1], preferred_element_type=jnp.float32)
    y_bot = jnp.dot(r, b3_ref[l, 2], preferred_element_type=jnp.float32)

    # Vertical taps: shift the tap results one image-row down/up (circular
    # roll over the flattened rows) and zero the rows that crossed an image
    # boundary.  Roll -> XLU, mask/select -> VPU (both have slack).
    hid = y_mid
    hid = hid + jnp.where(not_top, pltpu.roll(y_top, 1, axis=0), 0.0)
    hid = hid + jnp.where(not_bot, pltpu.roll(y_bot, M - 1, axis=0), 0.0)

    # ReLU -> 1x1 conv (block-diagonal matmul) -> residual add (f32).
    hbf = jnp.maximum(hid, 0.0).astype(w1_ref.dtype)
    act = act + jnp.dot(hbf, w1_ref[l], preferred_element_type=jnp.float32)

  # Final stack ReLU fused into the output write.
  out_ref[...] = jnp.maximum(act, 0.0).astype(out_ref.dtype)


# ----------------------------------------------------------------------------
# Wrapper-side weight repacking (pure layout plumbing, done once).
# ----------------------------------------------------------------------------
def _pack_params(params, W, dtype=jnp.bfloat16):
  """Repack per-layer (w3 HWIO, w1) into MXU-friendly banded / block-diag mats.

  w3: (3, 3, Cin, Chid);  w1: (Chid, Cout)
  returns b3_all: (L, 3, W*Cin, W*Chid),  w1_all: (L, W*Chid, W*Cout)
  """
  b3_list, w1_list = [], []
  eye_w = jnp.eye(W, dtype=jnp.float32)
  for (w3, w1) in params:
    bands = []
    for dy in range(3):
      band = jnp.zeros((W * w3.shape[2], W * w3.shape[3]), jnp.float32)
      for dx in range(3):
        # Source pixel w' = w + dx - 1 feeds output pixel w; out-of-range
        # pixels get no band entry -> implicit horizontal zero padding.
        shift = jnp.eye(W, W, k=1 - dx, dtype=jnp.float32)
        band = band + jnp.kron(shift, w3[dy, dx].astype(jnp.float32))
      bands.append(band)
    b3_list.append(jnp.stack(bands))                       # (3, W*Cin, W*Chid)
    w1_list.append(jnp.kron(eye_w, w1.astype(jnp.float32)))  # (W*Chid, W*Cout)
  return jnp.stack(b3_list).astype(dtype), jnp.stack(w1_list).astype(dtype)


def _pick_nblk(N, H, target_rows=128):
  """Largest divisor of N with nblk*H <= target_rows (M a multiple of 128 when
  possible; 128-row tiles also suit v5e's 4x128x128 MXU)."""
  nblk = 1
  for cand in range(1, N + 1):
    if N % cand == 0 and cand * H <= target_rows:
      nblk = cand
  return nblk


# ----------------------------------------------------------------------------
# NHWC-native entry point (preferred: keeps layout plumbing out of the model).
# ----------------------------------------------------------------------------
def residual_stack_nhwc(x_nhwc, params):
  """x_nhwc: (N, H, W, Cin); params: list of (w3 HWIO (3,3,Cin,Chid), w1 (Chid,Cout))."""
  N, H, W, Cin = x_nhwc.shape
  L = len(params)
  Chid = params[0][0].shape[-1]
  Cout = params[0][1].shape[-1]
  assert Cout == Cin, "residual add requires hidden_dim == in_channels"
  assert H % 8 == 0, "image rows must be sublane-aligned (multiple of 8)"
  # NOTE: W*Cin == 128 here gives full-width lanes; other combos still work
  # (block == full last dim) but produce masked partial stores.

  x2d = x_nhwc.reshape(N * H, W * Cin)              # free reshape, lane-dense
  b3_all, w1_all = _pack_params(params, W, dtype=jnp.bfloat16)

  nblk = _pick_nblk(N, H, target_rows=128)
  grid_n = N // nblk
  M = nblk * H

  kernel = functools.partial(_residual_stack_kernel, H=H, num_layers=L)

  out2d = pl.pallas_call(
      kernel,
      out_shape=jax.ShapeDtypeStruct((N * H, W * Cout), x_nhwc.dtype),
      grid_spec=pltpu.PrefetchScalarGridSpec(
          num_scalar_prefetch=0,
          grid=(grid_n,),
          in_specs=[
              pl.BlockSpec((M, W * Cin), lambda n: (n, 0)),
              # Constant index_maps: weights DMA'd once, stay VMEM-resident.
              pl.BlockSpec((L, 3, W * Cin, W * Chid), lambda n: (0, 0, 0, 0)),
              pl.BlockSpec((L, W * Chid, W * Cout), lambda n: (0, 0, 0)),
          ],
          out_specs=pl.BlockSpec((M, W * Cout), lambda n: (n, 0)),
      ),
      compiler_params=pltpu.CompilerParams(
          dimension_semantics=("parallel",),
          vmem_limit_bytes=32 * 1024 * 1024),
  )(x2d, b3_all, w1_all)

  return out2d.reshape(N, H, W, Cout)


# ----------------------------------------------------------------------------
# PyTorch-layout wrapper (NCHW in / NCHW out).  The two transposes are pure
# layout plumbing for the PyTorch interface; in a real model keep activations
# in NHWC and call residual_stack_nhwc directly.
# ----------------------------------------------------------------------------
def residual_stack(x_nchw, params):
  out_nhwc = residual_stack_nhwc(jnp.transpose(x_nchw, (0, 2, 3, 1)), params)
  return jnp.transpose(out_nhwc, (0, 3, 1, 2))


# ----------------------------------------------------------------------------
# Pure-JAX f32 reference (PyTorch semantics: bias-free convs, final ReLU).
# ----------------------------------------------------------------------------
def _ref_stack(x_nchw, params):
  x = x_nchw
  for (w3, w1) in params:
    h = jnp.maximum(x, 0.0)
    h = lax.conv_general_dilated(h, w3, (1, 1), "SAME",
                                 dimension_numbers=("NCHW", "HWIO", "NCHW"))
    h = jnp.maximum(h, 0.0)
    y = jnp.einsum("nchw,cd->ndhw", h, w1)
    x = x + y
  return jnp.maximum(x, 0.0)


# ----------------------------------------------------------------------------
if __name__ == "__main__":
  # Module config (hidden_dim must equal in_channels for the residual add).
  # batch=16 so the grid tiles 8 images/step -> M=128 matmul rows, grid=(2,).
  batch, H, W = 16, 16, 16
  in_channels = 8          # == hidden_dim
  hidden_dim = 8
  num_residual_layers = 2
  num_residual_hiddens = 4

  key = jax.random.PRNGKey(0)
  k_x, key = jax.random.split(key)
  x = jax.random.normal(k_x, (batch, in_channels, H, W), dtype=jnp.float32)

  params = []
  for _ in range(num_residual_layers):
    k3, k1, key = jax.random.split(key, 3)
    w3 = 0.1 * jax.random.normal(
        k3, (3, 3, in_channels, num_residual_hiddens), dtype=jnp.float32)
    w1 = 0.1 * jax.random.normal(
        k1, (num_residual_hiddens, hidden_dim), dtype=jnp.float32)
    params.append((w3, w1))

  run = jax.jit(residual_stack)
  out = jax.block_until_ready(run(x, params))
  ref = jax.block_until_ready(_ref_stack(x, params))

  assert out.shape == (batch, hidden_dim, H, W)
  err = float(jnp.max(jnp.abs(out - ref)))
  # Matmul operands are bf16 (f32 accumulation) -> loose elementwise tolerance
  # vs. the f32 reference; structural bugs would show up as O(0.1-1) errors.
  assert err < 5e-2, f"mismatch vs JAX reference: {err}"

  print("KERNEL_OK")
</pallas_src>

<mosaic_0001>
module attributes {stable_mosaic.version = 11 : i64} {
  func.func @_residual_stack_kernel(%arg0: i32, %arg1: memref<128x128xf32, #tpu.memory_space<vmem>>, %arg2: memref<2x3x128x64xbf16, #tpu.memory_space<vmem>>, %arg3: memref<2x64x128xbf16, #tpu.memory_space<vmem>>, %arg4: memref<128x128xf32, #tpu.memory_space<vmem>>) attributes {dimension_semantics = [#tpu.dimension_semantics<parallel>], iteration_bounds = array<i64: 2>, scalar_prefetch = 0 : i64, scratch_operands = 0 : i64, tpu.core_type = #tpu.core_type<tc>, window_params = [{transform_indices = @transform_0, window_bounds = array<i64: 128, 128>}, {pipeline_mode = #tpu.pipeline_mode<synchronous>, transform_indices = @transform_1, window_bounds = array<i64: 2, 3, 128, 64>}, {pipeline_mode = #tpu.pipeline_mode<synchronous>, transform_indices = @transform_2, window_bounds = array<i64: 2, 64, 128>}, {transform_indices = @transform_3, window_bounds = array<i64: 128, 128>}]} {
    %0 = tpu.iota {dimensions = array<i32: 0>} : vector<128x1xi32>
    %c16_i32 = arith.constant 16 : i32
    %c0_i32 = arith.constant 0 : i32
    %1 = arith.cmpi eq, %c16_i32, %c0_i32 : i32
    %c1_i32 = arith.constant 1 : i32
    %2 = arith.select %1, %c1_i32, %c16_i32 : i32
    %3 = vector.broadcast %2 : i32 to vector<128x1xi32>
    %4 = arith.remsi %0, %3 : vector<128x1xi32>
    %c0_i32_0 = arith.constant 0 : i32
    %5 = vector.broadcast %c0_i32_0 : i32 to vector<128x1xi32>
    %6 = arith.cmpi ne, %4, %5 : vector<128x1xi32>
    %c0_i32_1 = arith.constant 0 : i32
    %7 = vector.broadcast %c0_i32_1 : i32 to vector<128x1xi32>
    %8 = arith.cmpi slt, %4, %7 : vector<128x1xi32>
    %c0_i32_2 = arith.constant 0 : i32
    %9 = arith.cmpi slt, %2, %c0_i32_2 : i32
    %10 = vector.broadcast %9 : i1 to vector<128x1xi1>
    %11 = vector.broadcast %10 : vector<128x1xi1> to vector<128x1xi1>
    %12 = arith.xori %8, %11 : vector<128x1xi1>
    %13 = arith.andi %12, %6 : vector<128x1xi1>
    %14 = vector.broadcast %2 : i32 to vector<128x1xi32>
    %15 = arith.addi %4, %14 : vector<128x1xi32>
    %16 = arith.select %13, %15, %4 : vector<128x1xi1>, vector<128x1xi32>
    %c0_i32_3 = arith.constant 0 : i32
    %17 = vector.broadcast %c0_i32_3 : i32 to vector<128x1xi32>
    %18 = arith.cmpi ne, %16, %17 : vector<128x1xi32>
    %c15_i32 = arith.constant 15 : i32
    %19 = vector.broadcast %c15_i32 : i32 to vector<128x1xi32>
    %20 = arith.cmpi ne, %16, %19 : vector<128x1xi32>
    %c0 = arith.constant 0 : index
    %c0_4 = arith.constant 0 : index
    %21 = vector.load %arg1[%c0, %c0_4] : memref<128x128xf32, #tpu.memory_space<vmem>>, vector<128x128xf32>
    %cst = arith.constant 0.000000e+00 : f32
    %22 = vector.broadcast %cst : f32 to vector<128x128xf32>
    %23 = arith.maximumf %21, %22 : vector<128x128xf32>
    %24 = arith.truncf %23 : vector<128x128xf32> to vector<128x128xbf16>
    %c0_5 = arith.constant 0 : index
    %c0_6 = arith.constant 0 : index
    %c0_7 = arith.constant 0 : index
    %c0_8 = arith.constant 0 : index
    %25 = vector.load %arg2[%c0_5, %c0_6, %c0_7, %c0_8] : memref<2x3x128x64xbf16, #tpu.memory_space<vmem>>, vector<1x1x128x64xbf16>
    %26 = vector.shape_cast %25 : vector<1x1x128x64xbf16> to vector<128x64xbf16>
    %cst_9 = arith.constant dense<0.000000e+00> : vector<128x64xf32>
    %27 = tpu.matmul %24, %26, %cst_9 {dimension_numbers = #tpu.dot_dimension_numbers<[1], [0], [0], [1], [0, 0, 1, 1], [], []>} : vector<128x128xbf16>, vector<128x64xbf16>, vector<128x64xf32> -> vector<128x64xf32>
    %c0_10 = arith.constant 0 : index
    %c1 = arith.constant 1 : index
    %c0_11 = arith.constant 0 : index
    %c0_12 = arith.constant 0 : index
    %28 = vector.load %arg2[%c0_10, %c1, %c0_11, %c0_12] : memref<2x3x128x64xbf16, #tpu.memory_space<vmem>>, vector<1x1x128x64xbf16>
    %29 = vector.shape_cast %28 : vector<1x1x128x64xbf16> to vector<128x64xbf16>
    %cst_13 = arith.constant dense<0.000000e+00> : vector<128x64xf32>
    %30 = tpu.matmul %24, %29, %cst_13 {dimension_numbers = #tpu.dot_dimension_numbers<[1], [0], [0], [1], [0, 0, 1, 1], [], []>} : vector<128x128xbf16>, vector<128x64xbf16>, vector<128x64xf32> -> vector<128x64xf32>
    %c0_14 = arith.constant 0 : index
    %c2 = arith.constant 2 : index
    %c0_15 = arith.constant 0 : index
    %c0_16 = arith.constant 0 : index
    %31 = vector.load %arg2[%c0_14, %c2, %c0_15, %c0_16] : memref<2x3x128x64xbf16, #tpu.memory_space<vmem>>, vector<1x1x128x64xbf16>
    %32 = vector.shape_cast %31 : vector<1x1x128x64xbf16> to vector<128x64xbf16>
    %cst_17 = arith.constant dense<0.000000e+00> : vector<128x64xf32>
    %33 = tpu.matmul %24, %32, %cst_17 {dimension_numbers = #tpu.dot_dimension_numbers<[1], [0], [0], [1], [0, 0, 1, 1], [], []>} : vector<128x128xbf16>, vector<128x64xbf16>, vector<128x64xf32> -> vector<128x64xf32>
    %c1_i32_18 = arith.constant 1 : i32
    %34 = tpu.dynamic_rotate %27 by %c1_i32_18 dim 0 : vector<128x64xf32>, i32 -> vector<128x64xf32>
    %cst_19 = arith.constant 0.000000e+00 : f32
    %35 = vector.shape_cast %18 : vector<128x1xi1> to vector<128x1xi1>
    %36 = vector.broadcast %35 : vector<128x1xi1> to vector<128x64xi1>
    %37 = vector.broadcast %cst_19 : f32 to vector<128x64xf32>
    %38 = arith.select %36, %34, %37 : vector<128x64xi1>, vector<128x64xf32>
    %39 = arith.addf %30, %38 : vector<128x64xf32>
    %c127_i32 = arith.constant 127 : i32
    %40 = tpu.dynamic_rotate %33 by %c127_i32 dim 0 : vector<128x64xf32>, i32 -> vector<128x64xf32>
    %cst_20 = arith.constant 0.000000e+00 : f32
    %41 = vector.shape_cast %20 : vector<128x1xi1> to vector<128x1xi1>
    %42 = vector.broadcast %41 : vector<128x1xi1> to vector<128x64xi1>
    %43 = vector.broadcast %cst_20 : f32 to vector<128x64xf32>
    %44 = arith.select %42, %40, %43 : vector<128x64xi1>, vector<128x64xf32>
    %45 = arith.addf %39, %44 : vector<128x64xf32>
    %cst_21 = arith.constant 0.000000e+00 : f32
    %46 = vector.broadcast %cst_21 : f32 to vector<128x64xf32>
    %47 = arith.maximumf %45, %46 : vector<128x64xf32>
    %48 = arith.truncf %47 : vector<128x64xf32> to vector<128x64xbf16>
    %c0_22 = arith.constant 0 : index
    %c0_23 = arith.constant 0 : index
    %c0_24 = arith.constant 0 : index
    %49 = vector.load %arg3[%c0_22, %c0_23, %c0_24] : memref<2x64x128xbf16, #tpu.memory_space<vmem>>, vector<1x64x128xbf16>
    %50 = vector.shape_cast %49 : vector<1x64x128xbf16> to vector<64x128xbf16>
    %cst_25 = arith.constant dense<0.000000e+00> : vector<128x128xf32>
    %51 = tpu.matmul %48, %50, %cst_25 {dimension_numbers = #tpu.dot_dimension_numbers<[1], [0], [0], [1], [0, 0, 1, 1], [], []>} : vector<128x64xbf16>, vector<64x128xbf16>, vector<128x128xf32> -> vector<128x128xf32>
    %52 = arith.addf %21, %51 : vector<128x128xf32>
    %cst_26 = arith.constant 0.000000e+00 : f32
    %53 = vector.broadcast %cst_26 : f32 to vector<128x128xf32>
    %54 = arith.maximumf %52, %53 : vector<128x128xf32>
    %55 = arith.truncf %54 : vector<128x128xf32> to vector<128x128xbf16>
    %c1_27 = arith.constant 1 : index
    %c0_28 = arith.constant 0 : index
    %c0_29 = arith.constant 0 : index
    %c0_30 = arith.constant 0 : index
    %56 = vector.load %arg2[%c1_27, %c0_28, %c0_29, %c0_30] : memref<2x3x128x64xbf16, #tpu.memory_space<vmem>>, vector<1x1x128x64xbf16>
    %57 = vector.shape_cast %56 : vector<1x1x128x64xbf16> to vector<128x64xbf16>
    %cst_31 = arith.constant dense<0.000000e+00> : vector<128x64xf32>
    %58 = tpu.matmul %55, %57, %cst_31 {dimension_numbers = #tpu.dot_dimension_numbers<[1], [0], [0], [1], [0, 0, 1, 1], [], []>} : vector<128x128xbf16>, vector<128x64xbf16>, vector<128x64xf32> -> vector<128x64xf32>
    %c1_32 = arith.constant 1 : index
    %c1_33 = arith.constant 1 : index
    %c0_34 = arith.constant 0 : index
    %c0_35 = arith.constant 0 : index
    %59 = vector.load %arg2[%c1_32, %c1_33, %c0_34, %c0_35] : memref<2x3x128x64xbf16, #tpu.memory_space<vmem>>, vector<1x1x128x64xbf16>
    %60 = vector.shape_cast %59 : vector<1x1x128x64xbf16> to vector<128x64xbf16>
    %cst_36 = arith.constant dense<0.000000e+00> : vector<128x64xf32>
    %61 = tpu.matmul %55, %60, %cst_36 {dimension_numbers = #tpu.dot_dimension_numbers<[1], [0], [0], [1], [0, 0, 1, 1], [], []>} : vector<128x128xbf16>, vector<128x64xbf16>, vector<128x64xf32> -> vector<128x64xf32>
    %c1_37 = arith.constant 1 : index
    %c2_38 = arith.constant 2 : index
    %c0_39 = arith.constant 0 : index
    %c0_40 = arith.constant 0 : index
    %62 = vector.load %arg2[%c1_37, %c2_38, %c0_39, %c0_40] : memref<2x3x128x64xbf16, #tpu.memory_space<vmem>>, vector<1x1x128x64xbf16>
    %63 = vector.shape_cast %62 : vector<1x1x128x64xbf16> to vector<128x64xbf16>
    %cst_41 = arith.constant dense<0.000000e+00> : vector<128x64xf32>
    %64 = tpu.matmul %55, %63, %cst_41 {dimension_numbers = #tpu.dot_dimension_numbers<[1], [0], [0], [1], [0, 0, 1, 1], [], []>} : vector<128x128xbf16>, vector<128x64xbf16>, vector<128x64xf32> -> vector<128x64xf32>
    %c1_i32_42 = arith.constant 1 : i32
    %65 = tpu.dynamic_rotate %58 by %c1_i32_42 dim 0 : vector<128x64xf32>, i32 -> vector<128x64xf32>
    %cst_43 = arith.constant 0.000000e+00 : f32
    %66 = vector.shape_cast %18 : vector<128x1xi1> to vector<128x1xi1>
    %67 = vector.broadcast %66 : vector<128x1xi1> to vector<128x64xi1>
    %68 = vector.broadcast %cst_43 : f32 to vector<128x64xf32>
    %69 = arith.select %67, %65, %68 : vector<128x64xi1>, vector<128x64xf32>
    %70 = arith.addf %61, %69 : vector<128x64xf32>
    %c127_i32_44 = arith.constant 127 : i32
    %71 = tpu.dynamic_rotate %64 by %c127_i32_44 dim 0 : vector<128x64xf32>, i32 -> vector<128x64xf32>
    %cst_45 = arith.constant 0.000000e+00 : f32
    %72 = vector.shape_cast %20 : vector<128x1xi1> to vector<128x1xi1>
    %73 = vector.broadcast %72 : vector<128x1xi1> to vector<128x64xi1>
    %74 = vector.broadcast %cst_45 : f32 to vector<128x64xf32>
    %75 = arith.select %73, %71, %74 : vector<128x64xi1>, vector<128x64xf32>
    %76 = arith.addf %70, %75 : vector<128x64xf32>
    %cst_46 = arith.constant 0.000000e+00 : f32
    %77 = vector.broadcast %cst_46 : f32 to vector<128x64xf32>
    %78 = arith.maximumf %76, %77 : vector<128x64xf32>
    %79 = arith.truncf %78 : vector<128x64xf32> to vector<128x64xbf16>
    %c1_47 = arith.constant 1 : index
    %c0_48 = arith.constant 0 : index
    %c0_49 = arith.constant 0 : index
    %80 = vector.load %arg3[%c1_47, %c0_48, %c0_49] : memref<2x64x128xbf16, #tpu.memory_space<vmem>>, vector<1x64x128xbf16>
    %81 = vector.shape_cast %80 : vector<1x64x128xbf16> to vector<64x128xbf16>
    %cst_50 = arith.constant dense<0.000000e+00> : vector<128x128xf32>
    %82 = tpu.matmul %79, %81, %cst_50 {dimension_numbers = #tpu.dot_dimension_numbers<[1], [0], [0], [1], [0, 0, 1, 1], [], []>} : vector<128x64xbf16>, vector<64x128xbf16>, vector<128x128xf32> -> vector<128x128xf32>
    %83 = arith.addf %52, %82 : vector<128x128xf32>
    %cst_51 = arith.constant 0.000000e+00 : f32
    %84 = vector.broadcast %cst_51 : f32 to vector<128x128xf32>
    %85 = arith.maximumf %83, %84 : vector<128x128xf32>
    %c0_52 = arith.constant 0 : index
    %c0_53 = arith.constant 0 : index
    %86 = vector.load %arg4[%c0_52, %c0_53] : memref<128x128xf32, #tpu.memory_space<vmem>>, vector<128x128xf32>
    tpu.vector_store %arg4[%c0_52, %c0_53], %85 {strides = array<i32>} : memref<128x128xf32, #tpu.memory_space<vmem>>, vector<128x128xf32>,
    return
  }
  func.func @transform_0(%arg0: i32) -> (i32, i32) {
    %c0_i32 = arith.constant 0 : i32
    %c0_i32_0 = arith.constant 0 : i32
    return %arg0, %c0_i32 : i32, i32
  }
  func.func @transform_1(%arg0: i32) -> (i32, i32, i32, i32) {
    %c0_i32 = arith.constant 0 : i32
    %c0_i32_0 = arith.constant 0 : i32
    %c0_i32_1 = arith.constant 0 : i32
    %c0_i32_2 = arith.constant 0 : i32
    %c0_i32_3 = arith.constant 0 : i32
    return %c0_i32, %c0_i32_0, %c0_i32_1, %c0_i32_2 : i32, i32, i32, i32
  }
  func.func @transform_2(%arg0: i32) -> (i32, i32, i32) {
    %c0_i32 = arith.constant 0 : i32
    %c0_i32_0 = arith.constant 0 : i32
    %c0_i32_1 = arith.constant 0 : i32
    %c0_i32_2 = arith.constant 0 : i32
    return %c0_i32, %c0_i32_0, %c0_i32_1 : i32, i32, i32
  }
  func.func @transform_3(%arg0: i32) -> (i32, i32) {
    %c0_i32 = arith.constant 0 : i32
    %c0_i32_0 = arith.constant 0 : i32
    return %arg0, %c0_i32 : i32, i32
  }
}

</mosaic_0001>

<llo_original>
// kernel: residual_stack.1
$region0: #{residual_stack.1}
  #allocation0 [shape = 'u32[]', space=smem, size = 0x4, offset = 0x4, fixed_abs, tag = 'smem constant byte address 0x4 - core index']
  #allocation1 [shape = 'u32[144,128]{1,0:T(1,128)}', space=vmem, size = 0x12000, scoped, tag = 'internal scratch']
  %s0 = inlined_call_operand.vmem [shape: f32[256,128], index: 0, kind: input, shape index: {}]
  %s1 = inlined_call_operand.vmem [shape: bf16[2,3,128,64], index: 1, kind: input, shape index: {}]
  %s2 = inlined_call_operand.vmem [shape: bf16[2,64,128], index: 2, kind: input, shape index: {}]
  %s3 = inlined_call_operand.vmem [shape: f32[256,128], index: 3, kind: output, shape index: {}]
  %s4 = sld [smem:[#allocation0]]
  $region45: #{residual_stack.1} parent=0
    _
  %s6 = ssub.s32 1, %s4
  %s7 = scalar_select 0, %s6, %s4
  loop: start=0, step=1, limit=4
  $region2: #{residual_stack.1} parent=0 // loop_pre_header
    _
  $region3: #{residual_stack.1} parent=0 // loop_header
    %s9 = sphi 0, %s13
    %p10 = scmp.ge.s32.totalorder %s9, 4
    %s19 = sphi 0, %s21
    %s22 = sphi 0, %s19
    %s23 = sphi 0, %s22
    %s39 = sphi 0, %s23
    %s43 = sphi 0, %s43
    %s45 = sphi 0, %s43
    %s46 = sphi 0, %s45
    %s60 = sphi 0, %s46
    %s64 = sphi 0, %s64
    %s66 = sphi 0, %s64
    %s67 = sphi 0, %s66
    %s81 = sphi 0, %s67
    %s87 = sphi 0, %s89
    %s90 = sphi 0, %s87
    %s91 = sphi 0, %s90
    %s107 = sphi 0, %s91
  $region4: #{residual_stack.1} parent=0 // loop_header_branch
    %12 = sbr.rel (%p10) target = $region8
  $region5: #{residual_stack.1} parent=0 // loop_body
    %s14 = ssub.s32 %s9, 1
    %s15 = ssub.s32 %s9, 2
    %s16 = sadd.s32 %s9, 1
    %s17 = ssub.s32 %s9, %s16
    %p18 = scmp.eq.s32.totalorder %s17, 0
    %s20 = sadd.s32 %s19, 1
    %s21 = scalar_select %p18, %s19, %s20
    %p24 = pneg %p18
    %p25 = scmp.eq.s32.totalorder %s9, 1
    %p26 = por %p24, %p25
    %p27 = scmp.ne.s32.totalorder %s19, %s22
    %p28 = scmp.eq.s32.totalorder %s9, 0
    %p29 = por %p27, %p28
    %p30 = scmp.ne.s32.totalorder %s19, %s22
    %p31 = scmp.eq.s32.totalorder %s14, 1
    %p32 = por %p30, %p31
    %p33 = scmp.ne.s32.totalorder %s22, %s23
    %p34 = scmp.eq.s32.totalorder %s14, 0
    %p35 = por %p33, %p34
    %p36 = scmp.ne.s32.totalorder %s22, %s23
    %p37 = scmp.eq.s32.totalorder %s15, 1
    %p38 = por %p36, %p37
    %p40 = scmp.ne.s32.totalorder %s23, %s39
    %p41 = scmp.eq.s32.totalorder %s15, 0
    %p42 = por %p40, %p41
    %s44 = sadd.s32 %s43, 1
    %p47 = scmp.eq.s32.totalorder %s9, 1
    %p48 = scmp.ne.s32.totalorder %s43, %s45
    %p49 = scmp.eq.s32.totalorder %s9, 0
    %p50 = por %p48, %p49
    %p51 = scmp.ne.s32.totalorder %s43, %s45
    %p52 = scmp.eq.s32.totalorder %s14, 1
    %p53 = por %p51, %p52
    %p54 = scmp.ne.s32.totalorder %s45, %s46
    %p55 = scmp.eq.s32.totalorder %s14, 0
    %p56 = por %p54, %p55
    %p57 = scmp.ne.s32.totalorder %s45, %s46
    %p58 = scmp.eq.s32.totalorder %s15, 1
    %p59 = por %p57, %p58
    %p61 = scmp.ne.s32.totalorder %s46, %s60
    %p62 = scmp.eq.s32.totalorder %s15, 0
    %p63 = por %p61, %p62
    %s65 = sadd.s32 %s64, 1
    %p68 = scmp.eq.s32.totalorder %s9, 1
    %p69 = scmp.ne.s32.totalorder %s64, %s66
    %p70 = scmp.eq.s32.totalorder %s9, 0
    %p71 = por %p69, %p70
    %p72 = scmp.ne.s32.totalorder %s64, %s66
    %p73 = scmp.eq.s32.totalorder %s14, 1
    %p74 = por %p72, %p73
    %p75 = scmp.ne.s32.totalorder %s66, %s67
    %p76 = scmp.eq.s32.totalorder %s14, 0
    %p77 = por %p75, %p76
    %p78 = scmp.ne.s32.totalorder %s66, %s67
    %p79 = scmp.eq.s32.totalorder %s15, 1
    %p80 = por %p78, %p79
    %p82 = scmp.ne.s32.totalorder %s67, %s81
    %p83 = scmp.eq.s32.totalorder %s15, 0
    %p84 = por %p82, %p83
    %s85 = ssub.s32 %s9, %s16
    %p86 = scmp.eq.s32.totalorder %s85, 0
    %s88 = sadd.s32 %s87, 1
    %s89 = scalar_select %p86, %s87, %s88
    %p92 = pneg %p86
    %p93 = scmp.eq.s32.totalorder %s9, 1
    %p94 = por %p92, %p93
    %p95 = scmp.ne.s32.totalorder %s87, %s90
    %p96 = scmp.eq.s32.totalorder %s9, 0
    %p97 = por %p95, %p96
    %p98 = scmp.ne.s32.totalorder %s87, %s90
    %p99 = scmp.eq.s32.totalorder %s14, 1
    %p100 = por %p98, %p99
    %p101 = scmp.ne.s32.totalorder %s90, %s91
    %p102 = scmp.eq.s32.totalorder %s14, 0
    %p103 = por %p101, %p102
    %p104 = scmp.ne.s32.totalorder %s90, %s91
    %p105 = scmp.eq.s32.totalorder %s15, 1
    %p106 = por %p104, %p105
    %p108 = scmp.ne.s32.totalorder %s91, %s107
    %p109 = scmp.eq.s32.totalorder %s15, 0
    %p110 = por %p108, %p109
    %p111 = scmp.le.s32.totalorder 1, %s9
    %p112 = scmp.lt.s32.totalorder %s9, 3
    %p113 = pnand %p111, %p112
    %p114 = pneg %p113
    // Predicated region
    $region9: #{residual_stack.1} parent=5 // pred_check
      _
    $region10: #{residual_stack.1} parent=5 // pred_check_branch
      %116 = sbr.rel (%p113) target = $region12
    $region11: #{residual_stack.1} parent=5 // pred_region
      %s117 = ssub.s32 %s9, 1
      // Predicated region
      $region13: #{residual_stack.1} parent=11 // pred_check
        %p118 = pneg %p56
      $region14: #{residual_stack.1} parent=11 // pred_check_branch
        %120 = sbr.rel (%p118) target = $region16
      $region15: #{residual_stack.1} parent=11 // pred_region
        _
      $region16: #{residual_stack.1} parent=11 // pred_fallthru
        _
      // Predicated region
      $region17: #{residual_stack.1} parent=11 // pred_check
        %p121 = pneg %p77
      $region18: #{residual_stack.1} parent=11 // pred_check_branch
        %123 = sbr.rel (%p121) target = $region20
      $region19: #{residual_stack.1} parent=11 // pred_region
        _
      $region20: #{residual_stack.1} parent=11 // pred_fallthru
        _
    $region12: #{residual_stack.1} parent=5 // pred_fallthru
      _
    %p124 = scmp.lt.s32.totalorder %s9, 2
    // Predicated region
    $region21: #{residual_stack.1} parent=5 // pred_check
      %p125 = pneg %p124
    $region22: #{residual_stack.1} parent=5 // pred_check_branch
      %127 = sbr.rel (%p125) target = $region24
    $region23: #{residual_stack.1} parent=5 // pred_region
      // Predicated region
      $region25: #{residual_stack.1} parent=23 // pred_check
        %p128 = pneg %p29
      $region26: #{residual_stack.1} parent=23 // pred_check_branch
        %130 = sbr.rel (%p128) target = $region28
      $region27: #{residual_stack.1} parent=23 // pred_region
        %s131 = smul.u32 16, %s9
        %p132 = scmp.lt.s32.totalorder %s131, 31
        %s133 = scalar_select %p132, %s131, 31
        %s134 = smul.addr %s133, 8
        %s135 = scalar_lea.vmem %s0, %s134
        %s136 = smul.u32 16, %s9
      $region28: #{residual_stack.1} parent=23 // pred_fallthru
        _
    $region24: #{residual_stack.1} parent=5 // pred_fallthru
      _
    %p137 = scmp.le.s32.totalorder 1, %s9
    %p138 = scmp.lt.s32.totalorder %s9, 3
    %p139 = pnand %p137, %p138
    %p140 = pneg %p139
    // Predicated region
    $region29: #{residual_stack.1} parent=5 // pred_check
      _
    $region30: #{residual_stack.1} parent=5 // pred_check_branch
      %142 = sbr.rel (%p139) target = $region32
    $region31: #{residual_stack.1} parent=5 // pred_region
      %s143 = ssub.s32 %s9, 1
      %s144 = smul.u32 16, %s14
      %p145 = scmp.lt.s32.totalorder %s144, 31
      %s146 = scalar_select %p145, %s144, 31
      %s147 = smul.addr %s146, 8
      %s148 = scalar_lea.vmem %s0, %s147
      %p149 = pneg %p35
      %p150 = pneg %p32
      %p151 = pneg %p56
      %p152 = pneg %p53
      %p153 = pneg %p77
      %p154 = pneg %p74
      %p155 = pneg %p103
      %p156 = pneg %p100
      %s157 = smul.u32 16, %s14
      %p158 = scmp.lt.s32.totalorder %s157, 31
      %s159 = scalar_select %p158, %s157, 31
      %s160 = smul.addr %s159, 8
      %s161 = scalar_lea.vmem %s3, %s160
      %s162 = smul.u32 16, %s14
      %p163 = scmp.lt.s32.totalorder %s162, 31
      %s164 = scalar_select %p163, %s162, 31
      %s165 = smul.addr %s164, 8
      %s166 = scalar_lea.vmem %s0, %s165
      %s167 = smul.u32 16, %s14
      %s168 = smul.u32 16, %s14
      %p169 = scmp.lt.s32.totalorder %s168, 31
      %s170 = scalar_select %p169, %s168, 31
      %s171 = smul.addr %s170, 8
      %s172 = scalar_lea.vmem %s3, %s171
      %s173 = smul.u32 16, %s14
      %v175 = vlaneseq
      %v176 = vshrl.u32 %v175, 7
      %v177 = vadd.s32 %v176, 8
      %v178 = vadd.s32 %v176, 16
      %v179 = vadd.s32 %v176, 24
      %v180 = vadd.s32 %v176, 32
      %v181 = vadd.s32 %v176, 40
      %v182 = vadd.s32 %v176, 48
      %v183 = vadd.s32 %v176, 56
      %v184 = vadd.s32 %v176, 64
      %v185 = vadd.s32 %v176, 72
      %v186 = vadd.s32 %v176, 80
      %v187 = vadd.s32 %v176, 88
      %v188 = vadd.s32 %v176, 96
      %v189 = vadd.s32 %v176, 104
      %v190 = vadd.s32 %v176, 112
      %v191 = vadd.s32 %v176, 120
      %vm192 = vcmp.lt.s32.totalorder %v176, 0
      %v193 = vsub.s32 0, %v176
      %v194 = vsel %vm192, %v193, %v176
      %v195 = vshrl.u32 %v194, 4
      %v196 = vand.u32 %v194, 15
      %v197 = vsub.s32 0, %v196
      %v198 = vsel %vm192, %v197, %v196
      %vm199 = vcmp.lt.s32.totalorder %v177, 0
      %v200 = vsub.s32 0, %v177
      %v201 = vsel %vm199, %v200, %v177
      %v202 = vshrl.u32 %v201, 4
      %v203 = vand.u32 %v201, 15
      %v204 = vsub.s32 0, %v203
      %v205 = vsel %vm199, %v204, %v203
      %vm206 = vcmp.lt.s32.totalorder %v178, 0
      %v207 = vsub.s32 0, %v178
      %v208 = vsel %vm206, %v207, %v178
      %v209 = vshrl.u32 %v208, 4
      %v210 = vand.u32 %v208, 15
      %v211 = vsub.s32 0, %v210
      %v212 = vsel %vm206, %v211, %v210
      %vm213 = vcmp.lt.s32.totalorder %v179, 0
      %v214 = vsub.s32 0, %v179
      %v215 = vsel %vm213, %v214, %v179
      %v216 = vshrl.u32 %v215, 4
      %v217 = vand.u32 %v215, 15
      %v218 = vsub.s32 0, %v217
      %v219 = vsel %vm213, %v218, %v217
      %vm220 = vcmp.lt.s32.totalorder %v180, 0
      %v221 = vsub.s32 0, %v180
      %v222 = vsel %vm220, %v221, %v180
      %v223 = vshrl.u32 %v222, 4
      %v224 = vand.u32 %v222, 15
      %v225 = vsub.s32 0, %v224
      %v226 = vsel %vm220, %v225, %v224
      %vm227 = vcmp.lt.s32.totalorder %v181, 0
      %v228 = vsub.s32 0, %v181
      %v229 = vsel %vm227, %v228, %v181
      %v230 = vshrl.u32 %v229, 4
      %v231 = vand.u32 %v229, 15
      %v232 = vsub.s32 0, %v231
      %v233 = vsel %vm227, %v232, %v231
      %vm234 = vcmp.lt.s32.totalorder %v182, 0
      %v235 = vsub.s32 0, %v182
      %v236 = vsel %vm234, %v235, %v182
      %v237 = vshrl.u32 %v236, 4
      %v238 = vand.u32 %v236, 15
      %v239 = vsub.s32 0, %v238
      %v240 = vsel %vm234, %v239, %v238
      %vm241 = vcmp.lt.s32.totalorder %v183, 0
      %v242 = vsub.s32 0, %v183
      %v243 = vsel %vm241, %v242, %v183
      %v244 = vshrl.u32 %v243, 4
      %v245 = vand.u32 %v243, 15
      %v246 = vsub.s32 0, %v245
      %v247 = vsel %vm241, %v246, %v245
      %vm248 = vcmp.lt.s32.totalorder %v184, 0
      %v249 = vsub.s32 0, %v184
      %v250 = vsel %vm248, %v249, %v184
      %v251 = vshrl.u32 %v250, 4
      %v252 = vand.u32 %v250, 15
      %v253 = vsub.s32 0, %v252
      %v254 = vsel %vm248, %v253, %v252
      %vm255 = vcmp.lt.s32.totalorder %v185, 0
      %v256 = vsub.s32 0, %v185
      %v257 = vsel %vm255, %v256, %v185
      %v258 = vshrl.u32 %v257, 4
      %v259 = vand.u32 %v257, 15
      %v260 = vsub.s32 0, %v259
      %v261 = vsel %vm255, %v260, %v259
      %vm262 = vcmp.lt.s32.totalorder %v186, 0
      %v263 = vsub.s32 0, %v186
      %v264 = vsel %vm262, %v263, %v186
      %v265 = vshrl.u32 %v264, 4
      %v266 = vand.u32 %v264, 15
      %v267 = vsub.s32 0, %v266
      %v268 = vsel %vm262, %v267, %v266
      %vm269 = vcmp.lt.s32.totalorder %v187, 0
      %v270 = vsub.s32 0, %v187
      %v271 = vsel %vm269, %v270, %v187
      %v272 = vshrl.u32 %v271, 4
      %v273 = vand.u32 %v271, 15
      %v274 = vsub.s32 0, %v273
      %v275 = vsel %vm269, %v274, %v273
      %vm276 = vcmp.lt.s32.totalorder %v188, 0
      %v277 = vsub.s32 0, %v188
      %v278 = vsel %vm276, %v277, %v188
      %v279 = vshrl.u32 %v278, 4
      %v280 = vand.u32 %v278, 15
      %v281 = vsub.s32 0, %v280
      %v282 = vsel %vm276, %v281, %v280
      %vm283 = vcmp.lt.s32.totalorder %v189, 0
      %v284 = vsub.s32 0, %v189
      %v285 = vsel %vm283, %v284, %v189
      %v286 = vshrl.u32 %v285, 4
      %v287 = vand.u32 %v285, 15
      %v288 = vsub.s32 0, %v287
      %v289 = vsel %vm283, %v288, %v287
      %vm290 = vcmp.lt.s32.totalorder %v190, 0
      %v291 = vsub.s32 0, %v190
      %v292 = vsel %vm290, %v291, %v190
      %v293 = vshrl.u32 %v292, 4
      %v294 = vand.u32 %v292, 15
      %v295 = vsub.s32 0, %v294
      %v296 = vsel %vm290, %v295, %v294
      %vm297 = vcmp.lt.s32.totalorder %v191, 0
      %v298 = vsub.s32 0, %v191
      %v299 = vsel %vm297, %v298, %v191
      %v300 = vshrl.u32 %v299, 4
      %v301 = vand.u32 %v299, 15
      %v302 = vsub.s32 0, %v301
      %v303 = vsel %vm297, %v302, %v301
      %vm304 = vcmp.ne.s32.totalorder %v198, 0
      %vm305 = vcmp.ne.s32.totalorder %v205, 0
      %vm306 = vcmp.ne.s32.totalorder %v212, 0
      %vm307 = vcmp.ne.s32.totalorder %v219, 0
      %vm308 = vcmp.ne.s32.totalorder %v226, 0
      %vm309 = vcmp.ne.s32.totalorder %v233, 0
      %vm310 = vcmp.ne.s32.totalorder %v240, 0
      %vm311 = vcmp.ne.s32.totalorder %v247, 0
      %vm312 = vcmp.ne.s32.totalorder %v254, 0
      %vm313 = vcmp.ne.s32.totalorder %v261, 0
      %vm314 = vcmp.ne.s32.totalorder %v268, 0
      %vm315 = vcmp.ne.s32.totalorder %v275, 0
      %vm316 = vcmp.ne.s32.totalorder %v282, 0
      %vm317 = vcmp.ne.s32.totalorder %v289, 0
      %vm318 = vcmp.ne.s32.totalorder %v296, 0
      %vm319 = vcmp.ne.s32.totalorder %v303, 0
      %vm320 = vcmp.lt.s32.totalorder %v198, 0
      %vm321 = vcmp.lt.s32.totalorder %v205, 0
      %vm322 = vcmp.lt.s32.totalorder %v212, 0
      %vm323 = vcmp.lt.s32.totalorder %v219, 0
      %vm324 = vcmp.lt.s32.totalorder %v226, 0
      %vm325 = vcmp.lt.s32.totalorder %v233, 0
      %vm326 = vcmp.lt.s32.totalorder %v240, 0
      %vm327 = vcmp.lt.s32.totalorder %v247, 0
      %vm328 = vcmp.lt.s32.totalorder %v254, 0
      %vm329 = vcmp.lt.s32.totalorder %v261, 0
      %vm330 = vcmp.lt.s32.totalorder %v268, 0
      %vm331 = vcmp.lt.s32.totalorder %v275, 0
      %vm332 = vcmp.lt.s32.totalorder %v282, 0
      %vm333 = vcmp.lt.s32.totalorder %v289, 0
      %vm334 = vcmp.lt.s32.totalorder %v296, 0
      %vm335 = vcmp.lt.s32.totalorder %v303, 0
      %vm336 = vmand %vm320, %vm304
      %vm337 = vmand %vm321, %vm305
      %vm338 = vmand %vm322, %vm306
      %vm339 = vmand %vm323, %vm307
      %vm340 = vmand %vm324, %vm308
      %vm341 = vmand %vm325, %vm309
      %vm342 = vmand %vm326, %vm310
      %vm343 = vmand %vm327, %vm311
      %vm344 = vmand %vm328, %vm312
      %vm345 = vmand %vm329, %vm313
      %vm346 = vmand %vm330, %vm314
      %vm347 = vmand %vm331, %vm315
      %vm348 = vmand %vm332, %vm316
      %vm349 = vmand %vm333, %vm317
      %vm350 = vmand %vm334, %vm318
      %vm351 = vmand %vm335, %vm319
      %v352 = vadd.s32 %v198, 16
      %v353 = vadd.s32 %v205, 16
      %v354 = vadd.s32 %v212, 16
      %v355 = vadd.s32 %v219, 16
      %v356 = vadd.s32 %v226, 16
      %v357 = vadd.s32 %v233, 16
      %v358 = vadd.s32 %v240, 16
      %v359 = vadd.s32 %v247, 16
      %v360 = vadd.s32 %v254, 16
      %v361 = vadd.s32 %v261, 16
      %v362 = vadd.s32 %v268, 16
      %v363 = vadd.s32 %v275, 16
      %v364 = vadd.s32 %v282, 16
      %v365 = vadd.s32 %v289, 16
      %v366 = vadd.s32 %v296, 16
      %v367 = vadd.s32 %v303, 16
      %v368 = vsel %vm336, %v352, %v198
      %v369 = vsel %vm337, %v353, %v205
      %v370 = vsel %vm338, %v354, %v212
      %v371 = vsel %vm339, %v355, %v219
      %v372 = vsel %vm340, %v356, %v226
      %v373 = vsel %vm341, %v357, %v233
      %v374 = vsel %vm342, %v358, %v240
      %v375 = vsel %vm343, %v359, %v247
      %v376 = vsel %vm344, %v360, %v254
      %v377 = vsel %vm345, %v361, %v261
      %v378 = vsel %vm346, %v362, %v268
      %v379 = vsel %vm347, %v363, %v275
      %v380 = vsel %vm348, %v364, %v282
      %v381 = vsel %vm349, %v365, %v289
      %v382 = vsel %vm350, %v366, %v296
      %v383 = vsel %vm351, %v367, %v303
      %vm384 = vcmp.ne.s32.totalorder %v368, 0
      %vm385 = vcmp.ne.s32.totalorder %v369, 0
      %vm386 = vcmp.ne.s32.totalorder %v370, 0
      %vm387 = vcmp.ne.s32.totalorder %v371, 0
      %vm388 = vcmp.ne.s32.totalorder %v372, 0
      %vm389 = vcmp.ne.s32.totalorder %v373, 0
      %vm390 = vcmp.ne.s32.totalorder %v374, 0
      %vm391 = vcmp.ne.s32.totalorder %v375, 0
      %vm392 = vcmp.ne.s32.totalorder %v376, 0
      %vm393 = vcmp.ne.s32.totalorder %v377, 0
      %vm394 = vcmp.ne.s32.totalorder %v378, 0
      %vm395 = vcmp.ne.s32.totalorder %v379, 0
      %vm396 = vcmp.ne.s32.totalorder %v380, 0
      %vm397 = vcmp.ne.s32.totalorder %v381, 0
      %vm398 = vcmp.ne.s32.totalorder %v382, 0
      %vm399 = vcmp.ne.s32.totalorder %v383, 0
      %vm400 = vcmp.ne.s32.totalorder %v368, 15
      %vm401 = vcmp.ne.s32.totalorder %v369, 15
      %vm402 = vcmp.ne.s32.totalorder %v370, 15
      %vm403 = vcmp.ne.s32.totalorder %v371, 15
      %vm404 = vcmp.ne.s32.totalorder %v372, 15
      %vm405 = vcmp.ne.s32.totalorder %v373, 15
      %vm406 = vcmp.ne.s32.totalorder %v374, 15
      %vm407 = vcmp.ne.s32.totalorder %v375, 15
      %vm408 = vcmp.ne.s32.totalorder %v376, 15
      %vm409 = vcmp.ne.s32.totalorder %v377, 15
      %vm410 = vcmp.ne.s32.totalorder %v378, 15
      %vm411 = vcmp.ne.s32.totalorder %v379, 15
      %vm412 = vcmp.ne.s32.totalorder %v380, 15
      %vm413 = vcmp.ne.s32.totalorder %v381, 15
      %vm414 = vcmp.ne.s32.totalorder %v382, 15
      %vm415 = vcmp.ne.s32.totalorder %v383, 15
      %v416 = vld [vmem:[%s166] sm:$0xff]
      %v417 = vld [vmem:[%s166 + $0x8] sm:$0xff]
      %v418 = vld [vmem:[%s166 + $0x10] sm:$0xff]
      %v419 = vld [vmem:[%s166 + $0x18] sm:$0xff]
      %v420 = vld [vmem:[%s166 + $0x20] sm:$0xff]
      %v421 = vld [vmem:[%s166 + $0x28] sm:$0xff]
      %v422 = vld [vmem:[%s166 + $0x30] sm:$0xff]
      %v423 = vld [vmem:[%s166 + $0x38] sm:$0xff]
      %v424 = vld [vmem:[%s166 + $0x40] sm:$0xff]
      %v425 = vld [vmem:[%s166 + $0x48] sm:$0xff]
      %v426 = vld [vmem:[%s166 + $0x50] sm:$0xff]
      %v427 = vld [vmem:[%s166 + $0x58] sm:$0xff]
      %v428 = vld [vmem:[%s166 + $0x60] sm:$0xff]
      %v429 = vld [vmem:[%s166 + $0x68] sm:$0xff]
      %v430 = vld [vmem:[%s166 + $0x70] sm:$0xff]
      %v431 = vld [vmem:[%s166 + $0x78] sm:$0xff]
      %v432 = vmax.f32 %v416, 0.0
      %v433 = vmax.f32 %v417, 0.0
      %v434 = vmax.f32 %v418, 0.0
      %v435 = vmax.f32 %v419, 0.0
      %v436 = vmax.f32 %v420, 0.0
      %v437 = vmax.f32 %v421, 0.0
      %v438 = vmax.f32 %v422, 0.0
      %v439 = vmax.f32 %v423, 0.0
      %v440 = vmax.f32 %v424, 0.0
      %v441 = vmax.f32 %v425, 0.0
      %v442 = vmax.f32 %v426, 0.0
      %v443 = vmax.f32 %v427, 0.0
      %v444 = vmax.f32 %v428, 0.0
      %v445 = vmax.f32 %v429, 0.0
      %v446 = vmax.f32 %v430, 0.0
      %v447 = vmax.f32 %v431, 0.0
      %v448 = vpack.c.bf16 %v433, %v432
      %v449 = vpack.c.bf16 %v435, %v434
      %v450 = vpack.c.bf16 %v437, %v436
      %v451 = vpack.c.bf16 %v439, %v438
      %v452 = vpack.c.bf16 %v441, %v440
      %v453 = vpack.c.bf16 %v443, %v442
      %v454 = vpack.c.bf16 %v445, %v444
      %v455 = vpack.c.bf16 %v447, %v446
      %v456 = vld [vmem:[%s1] sm:$0xf]
      %v457 = vld [vmem:[%s1 + $0x4] sm:$0xf]
      %v458 = vld [vmem:[%s1 + $0x8] sm:$0xf]
      %v459 = vld [vmem:[%s1 + $0xc] sm:$0xf]
      %v460 = vld [vmem:[%s1 + $0x10] sm:$0xf]
      %v461 = vld [vmem:[%s1 + $0x14] sm:$0xf]
      %v462 = vld [vmem:[%s1 + $0x18] sm:$0xf]
      %v463 = vld [vmem:[%s1 + $0x1c] sm:$0xf]
      %v464 = vld [vmem:[%s1 + $0x20] sm:$0xf]
      %v465 = vld [vmem:[%s1 + $0x24] sm:$0xf]
      %v466 = vld [vmem:[%s1 + $0x28] sm:$0xf]
      %v467 = vld [vmem:[%s1 + $0x2c] sm:$0xf]
      %v468 = vld [vmem:[%s1 + $0x30] sm:$0xf]
      %v469 = vld [vmem:[%s1 + $0x34] sm:$0xf]
      %v470 = vld [vmem:[%s1 + $0x38] sm:$0xf]
      %v471 = vld [vmem:[%s1 + $0x3c] sm:$0xf]
      %v488 = vunpack.c.l.b16 %v456
      %v489 = vunpack.c.l.b16 %v457
      %v490 = vunpack.c.l.b16 %v458
      %v491 = vunpack.c.l.b16 %v459
      %v492 = vunpack.c.l.b16 %v460
      %v493 = vunpack.c.l.b16 %v461
      %v494 = vunpack.c.l.b16 %v462
      %v495 = vunpack.c.l.b16 %v463
      %v496 = vunpack.c.l.b16 %v464
      %v497 = vunpack.c.l.b16 %v465
      %v498 = vunpack.c.l.b16 %v466
      %v499 = vunpack.c.l.b16 %v467
      %v500 = vunpack.c.l.b16 %v468
      %v501 = vunpack.c.l.b16 %v469
      %v502 = vunpack.c.l.b16 %v470
      %v503 = vunpack.c.l.b16 %v471
      %v504 = vpack.c.b16 %v489, %v488
      %v505 = vpack.c.b16 %v491, %v490
      %v506 = vpack.c.b16 %v493, %v492
      %v507 = vpack.c.b16 %v495, %v494
      %v508 = vpack.c.b16 %v497, %v496
      %v509 = vpack.c.b16 %v499, %v498
      %v510 = vpack.c.b16 %v501, %v500
      %v511 = vpack.c.b16 %v503, %v502
      %520 = vmatprep.subr.bf16.mxu0 0
      %521 = vmatpush1.bf16.msra.mxu0 %v511
      %522 = vmatprep.subr.bf16.mxu0 0
      %523 = vmatpush1.bf16.msra.mxu0 %v510
      %524 = vmatprep.subr.bf16.mxu0 0
      %525 = vmatpush1.bf16.msra.mxu0 %v509
      %526 = vmatprep.subr.bf16.mxu0 0
      %527 = vmatpush1.bf16.msra.mxu0 %v508
      %528 = vmatprep.subr.bf16.mxu0 0
      %529 = vmatpush1.bf16.msra.mxu0 %v507
      %530 = vmatprep.subr.bf16.mxu0 0
      %531 = vmatpush1.bf16.msra.mxu0 %v506
      %532 = vmatprep.subr.bf16.mxu0 0
      %533 = vmatpush1.bf16.msra.mxu0 %v505
      %534 = vmatprep.subr.bf16.mxu0 0
      %535 = vmatpush1.bf16.msra.mxu0 %v504
      %536 = vmatprep.subr.bf16.mxu0 0
      %537 = vmatpush2.bf16.msra.mxu0 0
      %538 = vmatprep.subr.bf16.mxu0 0
      %539 = vmatpush2.bf16.msra.mxu0 0
      %540 = vmatprep.subr.bf16.mxu0 0
      %541 = vmatpush2.bf16.msra.mxu0 0
      %542 = vmatprep.subr.bf16.mxu0 0
      %543 = vmatpush2.bf16.msra.mxu0 0
      %544 = vmatprep.subr.bf16.mxu0 0
      %545 = vmatpush2.bf16.msra.mxu0 0
      %546 = vmatprep.subr.bf16.mxu0 0
      %547 = vmatpush2.bf16.msra.mxu0 0
      %548 = vmatprep.subr.bf16.mxu0 0
      %549 = vmatpush2.bf16.msra.mxu0 0
      %550 = vmatprep.subr.bf16.mxu0 0
      %551 = vmatpush2.bf16.msra.mxu0 0
      %552 = vmatprep.mubr.bf16.mxu0 0
      %553 = vmatmul.mubr.bf16.gmra.mxu0 %v448
      %v554 = vpop.f32.mrf.mxu0
      %v555 = vadd.f32 0.0, %v554
      %v556 = vpop.f32.mrf.mxu0
      %v557 = vpop.f32.mrf.mxu0
      %v558 = vadd.f32 0.0, %v557
      %v559 = vpop.f32.mrf.mxu0
      %560 = vmatprep.mubr.bf16.mxu0 0
      %561 = vmatmul.mubr.bf16.gmra.mxu0 %v449
      %v562 = vpop.f32.mrf.mxu0
      %v563 = vadd.f32 0.0, %v562
      %v564 = vpop.f32.mrf.mxu0
      %v565 = vpop.f32.mrf.mxu0
      %v566 = vadd.f32 0.0, %v565
      %v567 = vpop.f32.mrf.mxu0
      %568 = vmatprep.mubr.bf16.mxu0 0
      %569 = vmatmul.mubr.bf16.gmra.mxu0 %v450
      %v570 = vpop.f32.mrf.mxu0
      %v571 = vadd.f32 0.0, %v570
      %v572 = vpop.f32.mrf.mxu0
      %v573 = vpop.f32.mrf.mxu0
      %v574 = vadd.f32 0.0, %v573
      %v575 = vpop.f32.mrf.mxu0
      %576 = vmatprep.mubr.bf16.mxu0 0
      %577 = vmatmul.mubr.bf16.gmra.mxu0 %v451
      %v578 = vpop.f32.mrf.mxu0
      %v579 = vadd.f32 0.0, %v578
      %v580 = vpop.f32.mrf.mxu0
      %v581 = vpop.f32.mrf.mxu0
      %v582 = vadd.f32 0.0, %v581
      %v583 = vpop.f32.mrf.mxu0
      %584 = vmatprep.mubr.bf16.mxu0 0
      %585 = vmatmul.mubr.bf16.gmra.mxu0 %v452
      %v586 = vpop.f32.mrf.mxu0
      %v587 = vadd.f32 0.0, %v586
      %v588 = vpop.f32.mrf.mxu0
      %v589 = vpop.f32.mrf.mxu0
      %v590 = vadd.f32 0.0, %v589
      %v591 = vpop.f32.mrf.mxu0
      %592 = vmatprep.mubr.bf16.mxu0 0
      %593 = vmatmul.mubr.bf16.gmra.mxu0 %v453
      %v594 = vpop.f32.mrf.mxu0
      %v595 = vadd.f32 0.0, %v594
      %v596 = vpop.f32.mrf.mxu0
      %v597 = vpop.f32.mrf.mxu0
      %v598 = vadd.f32 0.0, %v597
      %v599 = vpop.f32.mrf.mxu0
      %600 = vmatprep.mubr.bf16.mxu0 0
      %601 = vmatmul.mubr.bf16.gmra.mxu0 %v454
      %v602 = vpop.f32.mrf.mxu0
      %v603 = vadd.f32 0.0, %v602
      %v604 = vpop.f32.mrf.mxu0
      %v605 = vpop.f32.mrf.mxu0
      %v606 = vadd.f32 0.0, %v605
      %v607 = vpop.f32.mrf.mxu0
      %608 = vmatprep.mubr.bf16.mxu0 0
      %609 = vmatmul.mubr.bf16.gmra.mxu0 %v455
      %v610 = vpop.f32.mrf.mxu0
      %v611 = vadd.f32 0.0, %v610
      %v612 = vpop.f32.mrf.mxu0
      %v613 = vpop.f32.mrf.mxu0
      %v614 = vadd.f32 0.0, %v613
      %v615 = vpop.f32.mrf.mxu0
      %616 = vdwg.mxu0
      %s617 = scalar_lea.vmem %s1, 64
      %v618 = vld [vmem:[%s617] sm:$0xf]
      %v619 = vld [vmem:[%s617 + $0x4] sm:$0xf]
      %v620 = vld [vmem:[%s617 + $0x8] sm:$0xf]
      %v621 = vld [vmem:[%s617 + $0xc] sm:$0xf]
      %v622 = vld [vmem:[%s617 + $0x10] sm:$0xf]
      %v623 = vld [vmem:[%s617 + $0x14] sm:$0xf]
      %v624 = vld [vmem:[%s617 + $0x18] sm:$0xf]
      %v625 = vld [vmem:[%s617 + $0x1c] sm:$0xf]
      %v626 = vld [vmem:[%s617 + $0x20] sm:$0xf]
      %v627 = vld [vmem:[%s617 + $0x24] sm:$0xf]
      %v628 = vld [vmem:[%s617 + $0x28] sm:$0xf]
      %v629 = vld [vmem:[%s617 + $0x2c] sm:$0xf]
      %v630 = vld [vmem:[%s617 + $0x30] sm:$0xf]
      %v631 = vld [vmem:[%s617 + $0x34] sm:$0xf]
      %v632 = vld [vmem:[%s617 + $0x38] sm:$0xf]
      %v633 = vld [vmem:[%s617 + $0x3c] sm:$0xf]
      %s634 = scalar_lea.vmem %s1, 128
      %v635 = vld [vmem:[%s634] sm:$0xf]
      %v636 = vld [vmem:[%s634 + $0x4] sm:$0xf]
      %v637 = vld [vmem:[%s634 + $0x8] sm:$0xf]
      %v638 = vld [vmem:[%s634 + $0xc] sm:$0xf]
      %v639 = vld [vmem:[%s634 + $0x10] sm:$0xf]
      %v640 = vld [vmem:[%s634 + $0x14] sm:$0xf]
      %v641 = vld [vmem:[%s634 + $0x18] sm:$0xf]
      %v642 = vld [vmem:[%s634 + $0x1c] sm:$0xf]
      %v643 = vld [vmem:[%s634 + $0x20] sm:$0xf]
      %v644 = vld [vmem:[%s634 + $0x24] sm:$0xf]
      %v645 = vld [vmem:[%s634 + $0x28] sm:$0xf]
      %v646 = vld [vmem:[%s634 + $0x2c] sm:$0xf]
      %v647 = vld [vmem:[%s634 + $0x30] sm:$0xf]
      %v648 = vld [vmem:[%s634 + $0x34] sm:$0xf]
      %v649 = vld [vmem:[%s634 + $0x38] sm:$0xf]
      %v650 = vld [vmem:[%s634 + $0x3c] sm:$0xf]
      %v667 = vunpack.c.l.b16 %v635
      %v668 = vunpack.c.l.b16 %v636
      %v669 = vunpack.c.l.b16 %v637
      %v670 = vunpack.c.l.b16 %v638
      %v671 = vunpack.c.l.b16 %v639
      %v672 = vunpack.c.l.b16 %v640
      %v673 = vunpack.c.l.b16 %v641
      %v674 = vunpack.c.l.b16 %v642
      %v675 = vunpack.c.l.b16 %v643
      %v676 = vunpack.c.l.b16 %v644
      %v677 = vunpack.c.l.b16 %v645
      %v678 = vunpack.c.l.b16 %v646
      %v679 = vunpack.c.l.b16 %v647
      %v680 = vunpack.c.l.b16 %v648
      %v681 = vunpack.c.l.b16 %v649
      %v682 = vunpack.c.l.b16 %v650
      %v683 = vpack.c.b16 %v668, %v667
      %v684 = vpack.c.b16 %v670, %v669
      %v685 = vpack.c.b16 %v672, %v671
      %v686 = vpack.c.b16 %v674, %v673
      %v687 = vpack.c.b16 %v676, %v675
      %v688 = vpack.c.b16 %v678, %v677
      %v689 = vpack.c.b16 %v680, %v679
      %v690 = vpack.c.b16 %v682, %v681
      %699 = vmatprep.subr.bf16.mxu0 0
      %700 = vmatpush1.bf16.msra.mxu0 %v690
      %701 = vmatprep.subr.bf16.mxu0 0
      %702 = vmatpush1.bf16.msra.mxu0 %v689
      %703 = vmatprep.subr.bf16.mxu0 0
      %704 = vmatpush1.bf16.msra.mxu0 %v688
      %705 = vmatprep.subr.bf16.mxu0 0
      %706 = vmatpush1.bf16.msra.mxu0 %v687
      %707 = vmatprep.subr.bf16.mxu0 0
      %708 = vmatpush1.bf16.msra.mxu0 %v686
      %709 = vmatprep.subr.bf16.mxu0 0
      %710 = vmatpush1.bf16.msra.mxu0 %v685
      %711 = vmatprep.subr.bf16.mxu0 0
      %712 = vmatpush1.bf16.msra.mxu0 %v684
      %713 = vmatprep.subr.bf16.mxu0 0
      %714 = vmatpush1.bf16.msra.mxu0 %v683
      %715 = vmatprep.subr.bf16.mxu0 0
      %716 = vmatpush2.bf16.msra.mxu0 0
      %717 = vmatprep.subr.bf16.mxu0 0
      %718 = vmatpush2.bf16.msra.mxu0 0
      %719 = vmatprep.subr.bf16.mxu0 0
      %720 = vmatpush2.bf16.msra.mxu0 0
      %721 = vmatprep.subr.bf16.mxu0 0
      %722 = vmatpush2.bf16.msra.mxu0 0
      %723 = vmatprep.subr.bf16.mxu0 0
      %724 = vmatpush2.bf16.msra.mxu0 0
      %725 = vmatprep.subr.bf16.mxu0 0
      %726 = vmatpush2.bf16.msra.mxu0 0
      %727 = vmatprep.subr.bf16.mxu0 0
      %728 = vmatpush2.bf16.msra.mxu0 0
      %729 = vmatprep.subr.bf16.mxu0 0
      %730 = vmatpush2.bf16.msra.mxu0 0
      %731 = vmatprep.mubr.bf16.mxu0 0
      %732 = vmatmul.mubr.bf16.gmra.mxu0 %v448
      %v733 = vpop.f32.mrf.mxu0
      %v734 = vadd.f32 0.0, %v733
      %v735 = vpop.f32.mrf.mxu0
      %v736 = vpop.f32.mrf.mxu0
      %v737 = vadd.f32 0.0, %v736
      %v738 = vpop.f32.mrf.mxu0
      %739 = vmatprep.mubr.bf16.mxu0 0
      %740 = vmatmul.mubr.bf16.gmra.mxu0 %v449
      %v741 = vpop.f32.mrf.mxu0
      %v742 = vadd.f32 0.0, %v741
      %v743 = vpop.f32.mrf.mxu0
      %v744 = vpop.f32.mrf.mxu0
      %v745 = vadd.f32 0.0, %v744
      %v746 = vpop.f32.mrf.mxu0
      %747 = vmatprep.mubr.bf16.mxu0 0
      %748 = vmatmul.mubr.bf16.gmra.mxu0 %v450
      %v749 = vpop.f32.mrf.mxu0
      %v750 = vadd.f32 0.0, %v749
      %v751 = vpop.f32.mrf.mxu0
      %v752 = vpop.f32.mrf.mxu0
      %v753 = vadd.f32 0.0, %v752
      %v754 = vpop.f32.mrf.mxu0
      %755 = vmatprep.mubr.bf16.mxu0 0
      %756 = vmatmul.mubr.bf16.gmra.mxu0 %v451
      %v757 = vpop.f32.mrf.mxu0
      %v758 = vadd.f32 0.0, %v757
      %v759 = vpop.f32.mrf.mxu0
      %v760 = vpop.f32.mrf.mxu0
      %v761 = vadd.f32 0.0, %v760
      %v762 = vpop.f32.mrf.mxu0
      %763 = vmatprep.mubr.bf16.mxu0 0
      %764 = vmatmul.mubr.bf16.gmra.mxu0 %v452
      %v765 = vpop.f32.mrf.mxu0
      %v766 = vadd.f32 0.0, %v765
      %v767 = vpop.f32.mrf.mxu0
      %v768 = vpop.f32.mrf.mxu0
      %v769 = vadd.f32 0.0, %v768
      %v770 = vpop.f32.mrf.mxu0
      %771 = vmatprep.mubr.bf16.mxu0 0
      %772 = vmatmul.mubr.bf16.gmra.mxu0 %v453
      %v773 = vpop.f32.mrf.mxu0
      %v774 = vadd.f32 0.0, %v773
      %v775 = vpop.f32.mrf.mxu0
      %v776 = vpop.f32.mrf.mxu0
      %v777 = vadd.f32 0.0, %v776
      %v778 = vpop.f32.mrf.mxu0
      %779 = vmatprep.mubr.bf16.mxu0 0
      %780 = vmatmul.mubr.bf16.gmra.mxu0 %v454
      %v781 = vpop.f32.mrf.mxu0
      %v782 = vadd.f32 0.0, %v781
      %v783 = vpop.f32.mrf.mxu0
      %v784 = vpop.f32.mrf.mxu0
      %v785 = vadd.f32 0.0, %v784
      %v786 = vpop.f32.mrf.mxu0
      %787 = vmatprep.mubr.bf16.mxu0 0
      %788 = vmatmul.mubr.bf16.gmra.mxu0 %v455
      %v789 = vpop.f32.mrf.mxu0
      %v790 = vadd.f32 0.0, %v789
      %v791 = vpop.f32.mrf.mxu0
      %v792 = vpop.f32.mrf.mxu0
      %v793 = vadd.f32 0.0, %v792
      %v794 = vpop.f32.mrf.mxu0
      %795 = vdwg.mxu0
      %v796 = vrot.slane %v555, 7
      %v797 = vrot.slane %v558, 7
      %v798 = vrot.slane %v563, 7
      %v799 = vrot.slane %v566, 7
      %v800 = vrot.slane %v571, 7
      %v801 = vrot.slane %v574, 7
      %v802 = vrot.slane %v579, 7
      %v803 = vrot.slane %v582, 7
      %v804 = vrot.slane %v587, 7
      %v805 = vrot.slane %v590, 7
      %v806 = vrot.slane %v595, 7
      %v807 = vrot.slane %v598, 7
      %v808 = vrot.slane %v603, 7
      %v809 = vrot.slane %v606, 7
      %v810 = vrot.slane %v611, 7
      %v811 = vrot.slane %v614, 7
      %vm812 = vcmp.lt.s32.totalorder %v176, 1
      %v813 = vsel %vm812, %v810, %v811
      %v814 = vsel %vm812, %v809, %v810
      %v815 = vsel %vm812, %v808, %v809
      %v816 = vsel %vm812, %v807, %v808
      %v817 = vsel %vm812, %v806, %v807
      %v818 = vsel %vm812, %v805, %v806
      %v819 = vsel %vm812, %v804, %v805
      %v820 = vsel %vm812, %v803, %v804
      %v821 = vsel %vm812, %v802, %v803
      %v822 = vsel %vm812, %v801, %v802
      %v823 = vsel %vm812, %v800, %v801
      %v824 = vsel %vm812, %v799, %v800
      %v825 = vsel %vm812, %v798, %v799
      %v826 = vsel %vm812, %v797, %v798
      %v827 = vsel %vm812, %v796, %v797
      %v828 = vsel %vm812, %v811, %v796
      %v829 = vsel %vm384, 1, 0
      %v830 = vsel %vm385, 1, 0
      %v831 = vsel %vm386, 1, 0
      %v832 = vsel %vm387, 1, 0
      %v833 = vsel %vm388, 1, 0
      %v834 = vsel %vm389, 1, 0
      %v835 = vsel %vm390, 1, 0
      %v836 = vsel %vm391, 1, 0
      %v837 = vsel %vm392, 1, 0
      %v838 = vsel %vm393, 1, 0
      %v839 = vsel %vm394, 1, 0
      %v840 = vsel %vm395, 1, 0
      %v841 = vsel %vm396, 1, 0
      %v842 = vsel %vm397, 1, 0
      %v843 = vsel %vm398, 1, 0
      %v844 = vsel %vm399, 1, 0
      %vm845 = vcmp.eq.s32.totalorder %v829, 1
      %vm846 = vcmp.eq.s32.totalorder %v830, 1
      %vm847 = vcmp.eq.s32.totalorder %v831, 1
      %vm848 = vcmp.eq.s32.totalorder %v832, 1
      %vm849 = vcmp.eq.s32.totalorder %v833, 1
      %vm850 = vcmp.eq.s32.totalorder %v834, 1
      %vm851 = vcmp.eq.s32.totalorder %v835, 1
      %vm852 = vcmp.eq.s32.totalorder %v836, 1
      %vm853 = vcmp.eq.s32.totalorder %v837, 1
      %vm854 = vcmp.eq.s32.totalorder %v838, 1
      %vm855 = vcmp.eq.s32.totalorder %v839, 1
      %vm856 = vcmp.eq.s32.totalorder %v840, 1
      %vm857 = vcmp.eq.s32.totalorder %v841, 1
      %vm858 = vcmp.eq.s32.totalorder %v842, 1
      %vm859 = vcmp.eq.s32.totalorder %v843, 1
      %vm860 = vcmp.eq.s32.totalorder %v844, 1
      %v861 = vsel %vm845, %v828, 0.0
      %v862 = vsel %vm846, %v827, 0.0
      %v863 = vsel %vm847, %v826, 0.0
      %v864 = vsel %vm848, %v825, 0.0
      %v865 = vsel %vm849, %v824, 0.0
      %v866 = vsel %vm850, %v823, 0.0
      %v867 = vsel %vm851, %v822, 0.0
      %v868 = vsel %vm852, %v821, 0.0
      %v869 = vsel %vm853, %v820, 0.0
      %v870 = vsel %vm854, %v819, 0.0
      %v871 = vsel %vm855, %v818, 0.0
      %v872 = vsel %vm856, %v817, 0.0
      %v873 = vsel %vm857, %v816, 0.0
      %v874 = vsel %vm858, %v815, 0.0
      %v875 = vsel %vm859, %v814, 0.0
      %v876 = vsel %vm860, %v813, 0.0
      %v893 = vunpack.c.l.b16 %v618
      %v894 = vunpack.c.l.b16 %v619
      %v895 = vunpack.c.l.b16 %v620
      %v896 = vunpack.c.l.b16 %v621
      %v897 = vunpack.c.l.b16 %v622
      %v898 = vunpack.c.l.b16 %v623
      %v899 = vunpack.c.l.b16 %v624
      %v900 = vunpack.c.l.b16 %v625
      %v901 = vunpack.c.l.b16 %v626
      %v902 = vunpack.c.l.b16 %v627
      %v903 = vunpack.c.l.b16 %v628
      %v904 = vunpack.c.l.b16 %v629
      %v905 = vunpack.c.l.b16 %v630
      %v906 = vunpack.c.l.b16 %v631
      %v907 = vunpack.c.l.b16 %v632
      %v908 = vunpack.c.l.b16 %v633
      %v909 = vpack.c.b16 %v894, %v893
      %v910 = vpack.c.b16 %v896, %v895
      %v911 = vpack.c.b16 %v898, %v897
      %v912 = vpack.c.b16 %v900, %v899
      %v913 = vpack.c.b16 %v902, %v901
      %v914 = vpack.c.b16 %v904, %v903
      %v915 = vpack.c.b16 %v906, %v905
      %v916 = vpack.c.b16 %v908, %v907
      %925 = vmatprep.subr.bf16.mxu0 0
      %926 = vmatpush1.bf16.msra.mxu0 %v916
      %927 = vmatprep.subr.bf16.mxu0 0
      %928 = vmatpush1.bf16.msra.mxu0 %v915
      %929 = vmatprep.subr.bf16.mxu0 0
      %930 = vmatpush1.bf16.msra.mxu0 %v914
      %931 = vmatprep.subr.bf16.mxu0 0
      %932 = vmatpush1.bf16.msra.mxu0 %v913
      %933 = vmatprep.subr.bf16.mxu0 0
      %934 = vmatpush1.bf16.msra.mxu0 %v912
      %935 = vmatprep.subr.bf16.mxu0 0
      %936 = vmatpush1.bf16.msra.mxu0 %v911
      %937 = vmatprep.subr.bf16.mxu0 0
      %938 = vmatpush1.bf16.msra.mxu0 %v910
      %939 = vmatprep.subr.bf16.mxu0 0
      %940 = vmatpush1.bf16.msra.mxu0 %v909
      %941 = vmatprep.subr.bf16.mxu0 0
      %942 = vmatpush2.bf16.msra.mxu0 0
      %943 = vmatprep.subr.bf16.mxu0 0
      %944 = vmatpush2.bf16.msra.mxu0 0
      %945 = vmatprep.subr.bf16.mxu0 0
      %946 = vmatpush2.bf16.msra.mxu0 0
      %947 = vmatprep.subr.bf16.mxu0 0
      %948 = vmatpush2.bf16.msra.mxu0 0
      %949 = vmatprep.subr.bf16.mxu0 0
      %950 = vmatpush2.bf16.msra.mxu0 0
      %951 = vmatprep.subr.bf16.mxu0 0
      %952 = vmatpush2.bf16.msra.mxu0 0
      %953 = vmatprep.subr.bf16.mxu0 0
      %954 = vmatpush2.bf16.msra.mxu0 0
      %955 = vmatprep.subr.bf16.mxu0 0
      %956 = vmatpush2.bf16.msra.mxu0 0
      %957 = vmatprep.mubr.bf16.mxu0 0
      %958 = vmatmul.mubr.bf16.gmra.mxu0 %v448
      %v959 = vpop.f32.mrf.mxu0
      %v960 = vadd.f32 %v861, %v959
      %v961 = vpop.f32.mrf.mxu0
      %v962 = vpop.f32.mrf.mxu0
      %v963 = vadd.f32 %v862, %v962
      %v964 = vpop.f32.mrf.mxu0
      %965 = vmatprep.mubr.bf16.mxu0 0
      %966 = vmatmul.mubr.bf16.gmra.mxu0 %v449
      %v967 = vpop.f32.mrf.mxu0
      %v968 = vadd.f32 %v863, %v967
      %v969 = vpop.f32.mrf.mxu0
      %v970 = vpop.f32.mrf.mxu0
      %v971 = vadd.f32 %v864, %v970
      %v972 = vpop.f32.mrf.mxu0
      %973 = vmatprep.mubr.bf16.mxu0 0
      %974 = vmatmul.mubr.bf16.gmra.mxu0 %v450
      %v975 = vpop.f32.mrf.mxu0
      %v976 = vadd.f32 %v865, %v975
      %v977 = vpop.f32.mrf.mxu0
      %v978 = vpop.f32.mrf.mxu0
      %v979 = vadd.f32 %v866, %v978
      %v980 = vpop.f32.mrf.mxu0
      %981 = vmatprep.mubr.bf16.mxu0 0
      %982 = vmatmul.mubr.bf16.gmra.mxu0 %v451
      %v983 = vpop.f32.mrf.mxu0
      %v984 = vadd.f32 %v867, %v983
      %v985 = vpop.f32.mrf.mxu0
      %v986 = vpop.f32.mrf.mxu0
      %v987 = vadd.f32 %v868, %v986
      %v988 = vpop.f32.mrf.mxu0
      %989 = vmatprep.mubr.bf16.mxu0 0
      %990 = vmatmul.mubr.bf16.gmra.mxu0 %v452
      %v991 = vpop.f32.mrf.mxu0
      %v992 = vadd.f32 %v869, %v991
      %v993 = vpop.f32.mrf.mxu0
      %v994 = vpop.f32.mrf.mxu0
      %v995 = vadd.f32 %v870, %v994
      %v996 = vpop.f32.mrf.mxu0
      %997 = vmatprep.mubr.bf16.mxu0 0
      %998 = vmatmul.mubr.bf16.gmra.mxu0 %v453
      %v999 = vpop.f32.mrf.mxu0
      %v1000 = vadd.f32 %v871, %v999
      %v1001 = vpop.f32.mrf.mxu0
      %v1002 = vpop.f32.mrf.mxu0
      %v1003 = vadd.f32 %v872, %v1002
      %v1004 = vpop.f32.mrf.mxu0
      %1005 = vmatprep.mubr.bf16.mxu0 0
      %1006 = vmatmul.mubr.bf16.gmra.mxu0 %v454
      %v1007 = vpop.f32.mrf.mxu0
      %v1008 = vadd.f32 %v873, %v1007
      %v1009 = vpop.f32.mrf.mxu0
      %v1010 = vpop.f32.mrf.mxu0
      %v1011 = vadd.f32 %v874, %v1010
      %v1012 = vpop.f32.mrf.mxu0
      %1013 = vmatprep.mubr.bf16.mxu0 0
      %1014 = vmatmul.mubr.bf16.gmra.mxu0 %v455
      %v1015 = vpop.f32.mrf.mxu0
      %v1016 = vadd.f32 %v875, %v1015
      %v1017 = vpop.f32.mrf.mxu0
      %v1018 = vpop.f32.mrf.mxu0
      %v1019 = vadd.f32 %v876, %v1018
      %v1020 = vpop.f32.mrf.mxu0
      %1021 = vdwg.mxu0
      %v1022 = vrot.slane %v734, 1
      %v1023 = vrot.slane %v737, 1
      %v1024 = vrot.slane %v742, 1
      %v1025 = vrot.slane %v745, 1
      %v1026 = vrot.slane %v750, 1
      %v1027 = vrot.slane %v753, 1
      %v1028 = vrot.slane %v758, 1
      %v1029 = vrot.slane %v761, 1
      %v1030 = vrot.slane %v766, 1
      %v1031 = vrot.slane %v769, 1
      %v1032 = vrot.slane %v774, 1
      %v1033 = vrot.slane %v777, 1
      %v1034 = vrot.slane %v782, 1
      %v1035 = vrot.slane %v785, 1
      %v1036 = vrot.slane %v790, 1
      %v1037 = vrot.slane %v793, 1
      %vm1038 = vcmp.lt.s32.totalorder %v176, 7
      %v1039 = vsel %vm1038, %v1036, %v1037
      %v1040 = vsel %vm1038, %v1035, %v1036
      %v1041 = vsel %vm1038, %v1034, %v1035
      %v1042 = vsel %vm1038, %v1033, %v1034
      %v1043 = vsel %vm1038, %v1032, %v1033
      %v1044 = vsel %vm1038, %v1031, %v1032
      %v1045 = vsel %vm1038, %v1030, %v1031
      %v1046 = vsel %vm1038, %v1029, %v1030
      %v1047 = vsel %vm1038, %v1028, %v1029
      %v1048 = vsel %vm1038, %v1027, %v1028
      %v1049 = vsel %vm1038, %v1026, %v1027
      %v1050 = vsel %vm1038, %v1025, %v1026
      %v1051 = vsel %vm1038, %v1024, %v1025
      %v1052 = vsel %vm1038, %v1023, %v1024
      %v1053 = vsel %vm1038, %v1022, %v1023
      %v1054 = vsel %vm1038, %v1037, %v1022
      %v1055 = vsel %vm400, 1, 0
      %v1056 = vsel %vm401, 1, 0
      %v1057 = vsel %vm402, 1, 0
      %v1058 = vsel %vm403, 1, 0
      %v1059 = vsel %vm404, 1, 0
      %v1060 = vsel %vm405, 1, 0
      %v1061 = vsel %vm406, 1, 0
      %v1062 = vsel %vm407, 1, 0
      %v1063 = vsel %vm408, 1, 0
      %v1064 = vsel %vm409, 1, 0
      %v1065 = vsel %vm410, 1, 0
      %v1066 = vsel %vm411, 1, 0
      %v1067 = vsel %vm412, 1, 0
      %v1068 = vsel %vm413, 1, 0
      %v1069 = vsel %vm414, 1, 0
      %v1070 = vsel %vm415, 1, 0
      %vm1071 = vcmp.eq.s32.totalorder %v1055, 1
      %vm1072 = vcmp.eq.s32.totalorder %v1056, 1
      %vm1073 = vcmp.eq.s32.totalorder %v1057, 1
      %vm1074 = vcmp.eq.s32.totalorder %v1058, 1
      %vm1075 = vcmp.eq.s32.totalorder %v1059, 1
      %vm1076 = vcmp.eq.s32.totalorder %v1060, 1
      %vm1077 = vcmp.eq.s32.totalorder %v1061, 1
      %vm1078 = vcmp.eq.s32.totalorder %v1062, 1
      %vm1079 = vcmp.eq.s32.totalorder %v1063, 1
      %vm1080 = vcmp.eq.s32.totalorder %v1064, 1
      %vm1081 = vcmp.eq.s32.totalorder %v1065, 1
      %vm1082 = vcmp.eq.s32.totalorder %v1066, 1
      %vm1083 = vcmp.eq.s32.totalorder %v1067, 1
      %vm1084 = vcmp.eq.s32.totalorder %v1068, 1
      %vm1085 = vcmp.eq.s32.totalorder %v1069, 1
      %vm1086 = vcmp.eq.s32.totalorder %v1070, 1
      %v1087 = vsel %vm1071, %v1053, 0.0
      %v1088 = vsel %vm1072, %v1052, 0.0
      %v1089 = vsel %vm1073, %v1051, 0.0
      %v1090 = vsel %vm1074, %v1050, 0.0
      %v1091 = vsel %vm1075, %v1049, 0.0
      %v1092 = vsel %vm1076, %v1048, 0.0
      %v1093 = vsel %vm1077, %v1047, 0.0
      %v1094 = vsel %vm1078, %v1046, 0.0
      %v1095 = vsel %vm1079, %v1045, 0.0
      %v1096 = vsel %vm1080, %v1044, 0.0
      %v1097 = vsel %vm1081, %v1043, 0.0
      %v1098 = vsel %vm1082, %v1042, 0.0
      %v1099 = vsel %vm1083, %v1041, 0.0
      %v1100 = vsel %vm1084, %v1040, 0.0
      %v1101 = vsel %vm1085, %v1039, 0.0
      %v1102 = vsel %vm1086, %v1054, 0.0
      %v1103 = vadd.f32 %v960, %v1087
      %v1104 = vadd.f32 %v963, %v1088
      %v1105 = vadd.f32 %v968, %v1089
      %v1106 = vadd.f32 %v971, %v1090
      %v1107 = vadd.f32 %v976, %v1091
      %v1108 = vadd.f32 %v979, %v1092
      %v1109 = vadd.f32 %v984, %v1093
      %v1110 = vadd.f32 %v987, %v1094
      %v1111 = vadd.f32 %v992, %v1095
      %v1112 = vadd.f32 %v995, %v1096
      %v1113 = vadd.f32 %v1000, %v1097
      %v1114 = vadd.f32 %v1003, %v1098
      %v1115 = vadd.f32 %v1008, %v1099
      %v1116 = vadd.f32 %v1011, %v1100
      %v1117 = vadd.f32 %v1016, %v1101
      %v1118 = vadd.f32 %v1019, %v1102
      %v1119 = vmax.f32 %v1103, 0.0
      %v1120 = vmax.f32 %v1104, 0.0
      %v1121 = vmax.f32 %v1105, 0.0
      %v1122 = vmax.f32 %v1106, 0.0
      %v1123 = vmax.f32 %v1107, 0.0
      %v1124 = vmax.f32 %v1108, 0.0
      %v1125 = vmax.f32 %v1109, 0.0
      %v1126 = vmax.f32 %v1110, 0.0
      %v1127 = vmax.f32 %v1111, 0.0
      %v1128 = vmax.f32 %v1112, 0.0
      %v1129 = vmax.f32 %v1113, 0.0
      %v1130 = vmax.f32 %v1114, 0.0
      %v1131 = vmax.f32 %v1115, 0.0
      %v1132 = vmax.f32 %v1116, 0.0
      %v1133 = vmax.f32 %v1117, 0.0
      %v1134 = vmax.f32 %v1118, 0.0
      %v1135 = vpack.c.bf16 %v1120, %v1119
      %v1136 = vpack.c.bf16 %v1122, %v1121
      %v1137 = vpack.c.bf16 %v1124, %v1123
      %v1138 = vpack.c.bf16 %v1126, %v1125
      %v1139 = vpack.c.bf16 %v1128, %v1127
      %v1140 = vpack.c.bf16 %v1130, %v1129
      %v1141 = vpack.c.bf16 %v1132, %v1131
      %v1142 = vpack.c.bf16 %v1134, %v1133
      %v1143 = vld [vmem:[%s2] sm:$0xf]
      %v1144 = vld [vmem:[%s2 + $0x4] sm:$0xf]
      %v1145 = vld [vmem:[%s2 + $0x8] sm:$0xf]
      %v1146 = vld [vmem:[%s2 + $0xc] sm:$0xf]
      %v1147 = vld [vmem:[%s2 + $0x10] sm:$0xf]
      %v1148 = vld [vmem:[%s2 + $0x14] sm:$0xf]
      %v1149 = vld [vmem:[%s2 + $0x18] sm:$0xf]
      %v1150 = vld [vmem:[%s2 + $0x1c] sm:$0xf]
      %v1159 = vunpack.c.l.b16 %v1143
      %v1160 = vunpack.c.l.b16 %v1144
      %v1161 = vunpack.c.l.b16 %v1145
      %v1162 = vunpack.c.l.b16 %v1146
      %v1163 = vunpack.c.l.b16 %v1147
      %v1164 = vunpack.c.l.b16 %v1148
      %v1165 = vunpack.c.l.b16 %v1149
      %v1166 = vunpack.c.l.b16 %v1150
      %v1167 = vpack.c.b16 %v1160, %v1159
      %v1168 = vpack.c.b16 %v1162, %v1161
      %v1169 = vpack.c.b16 %v1164, %v1163
      %v1170 = vpack.c.b16 %v1166, %v1165
      %vm1175 = vcmask 523264
      %v1177 = vsel %vm1175, %v1135, 0
      %v1180 = vsel %vm1175, %v1136, 0
      %v1183 = vsel %vm1175, %v1137, 0
      %v1186 = vsel %vm1175, %v1138, 0
      %v1189 = vsel %vm1175, %v1139, 0
      %v1192 = vsel %vm1175, %v1140, 0
      %v1195 = vsel %vm1175, %v1141, 0
      %v1198 = vsel %vm1175, %v1142, 0
      %1200 = vmatprep.subr.bf16.mxu0 0
      %1201 = vmatpush1.bf16.msra.mxu0 0
      %1202 = vmatprep.subr.bf16.mxu0 0
      %1203 = vmatpush1.bf16.msra.mxu0 0
      %1204 = vmatprep.subr.bf16.mxu0 0
      %1205 = vmatpush1.bf16.msra.mxu0 0
      %1206 = vmatprep.subr.bf16.mxu0 0
      %1207 = vmatpush1.bf16.msra.mxu0 0
      %1208 = vmatprep.subr.bf16.mxu0 0
      %1209 = vmatpush1.bf16.msra.mxu0 %v1170
      %1210 = vmatprep.subr.bf16.mxu0 0
      %1211 = vmatpush1.bf16.msra.mxu0 %v1169
      %1212 = vmatprep.subr.bf16.mxu0 0
      %1213 = vmatpush1.bf16.msra.mxu0 %v1168
      %1214 = vmatprep.subr.bf16.mxu0 0
      %1215 = vmatpush1.bf16.msra.mxu0 %v1167
      %1216 = vmatprep.subr.bf16.mxu0 0
      %1217 = vmatpush2.bf16.msra.mxu0 0
      %1218 = vmatprep.subr.bf16.mxu0 0
      %1219 = vmatpush2.bf16.msra.mxu0 0
      %1220 = vmatprep.subr.bf16.mxu0 0
      %1221 = vmatpush2.bf16.msra.mxu0 0
      %1222 = vmatprep.subr.bf16.mxu0 0
      %1223 = vmatpush2.bf16.msra.mxu0 0
      %1224 = vmatprep.subr.bf16.mxu0 0
      %1225 = vmatpush2.bf16.msra.mxu0 0
      %1226 = vmatprep.subr.bf16.mxu0 0
      %1227 = vmatpush2.bf16.msra.mxu0 0
      %1228 = vmatprep.subr.bf16.mxu0 0
      %1229 = vmatpush2.bf16.msra.mxu0 0
      %1230 = vmatprep.subr.bf16.mxu0 0
      %1231 = vmatpush2.bf16.msra.mxu0 0
      %1232 = vmatprep.mubr.bf16.mxu0 0
      %1233 = vmatmul.mubr.bf16.gmra.mxu0 %v1177
      %v1234 = vpop.f32.mrf.mxu0
      %v1235 = vadd.f32 0.0, %v1234
      %v1236 = vpop.f32.mrf.mxu0
      %v1237 = vpop.f32.mrf.mxu0
      %v1238 = vadd.f32 0.0, %v1237
      %v1239 = vpop.f32.mrf.mxu0
      %1240 = vmatprep.mubr.bf16.mxu0 0
      %1241 = vmatmul.mubr.bf16.gmra.mxu0 %v1180
      %v1242 = vpop.f32.mrf.mxu0
      %v1243 = vadd.f32 0.0, %v1242
      %v1244 = vpop.f32.mrf.mxu0
      %v1245 = vpop.f32.mrf.mxu0
      %v1246 = vadd.f32 0.0, %v1245
      %v1247 = vpop.f32.mrf.mxu0
      %1248 = vmatprep.mubr.bf16.mxu0 0
      %1249 = vmatmul.mubr.bf16.gmra.mxu0 %v1183
      %v1250 = vpop.f32.mrf.mxu0
      %v1251 = vadd.f32 0.0, %v1250
      %v1252 = vpop.f32.mrf.mxu0
      %v1253 = vpop.f32.mrf.mxu0
      %v1254 = vadd.f32 0.0, %v1253
      %v1255 = vpop.f32.mrf.mxu0
      %1256 = vmatprep.mubr.bf16.mxu0 0
      %1257 = vmatmul.mubr.bf16.gmra.mxu0 %v1186
      %v1258 = vpop.f32.mrf.mxu0
      %v1259 = vadd.f32 0.0, %v1258
      %v1260 = vpop.f32.mrf.mxu0
      %v1261 = vpop.f32.mrf.mxu0
      %v1262 = vadd.f32 0.0, %v1261
      %v1263 = vpop.f32.mrf.mxu0
      %1264 = vmatprep.mubr.bf16.mxu0 0
      %1265 = vmatmul.mubr.bf16.gmra.mxu0 %v1189
      %v1266 = vpop.f32.mrf.mxu0
      %v1267 = vadd.f32 0.0, %v1266
      %v1268 = vpop.f32.mrf.mxu0
      %v1269 = vpop.f32.mrf.mxu0
      %v1270 = vadd.f32 0.0, %v1269
      %v1271 = vpop.f32.mrf.mxu0
      %1272 = vmatprep.mubr.bf16.mxu0 0
      %1273 = vmatmul.mubr.bf16.gmra.mxu0 %v1192
      %v1274 = vpop.f32.mrf.mxu0
      %v1275 = vadd.f32 0.0, %v1274
      %v1276 = vpop.f32.mrf.mxu0
      %v1277 = vpop.f32.mrf.mxu0
      %v1278 = vadd.f32 0.0, %v1277
      %v1279 = vpop.f32.mrf.mxu0
      %1280 = vmatprep.mubr.bf16.mxu0 0
      %1281 = vmatmul.mubr.bf16.gmra.mxu0 %v1195
      %v1282 = vpop.f32.mrf.mxu0
      %v1283 = vadd.f32 0.0, %v1282
      %v1284 = vpop.f32.mrf.mxu0
      %v1285 = vpop.f32.mrf.mxu0
      %v1286 = vadd.f32 0.0, %v1285
      %v1287 = vpop.f32.mrf.mxu0
      %1288 = vmatprep.mubr.bf16.mxu0 0
      %1289 = vmatmul.mubr.bf16.gmra.mxu0 %v1198
      %v1290 = vpop.f32.mrf.mxu0
      %v1291 = vadd.f32 0.0, %v1290
      %v1292 = vpop.f32.mrf.mxu0
      %v1293 = vpop.f32.mrf.mxu0
      %v1294 = vadd.f32 0.0, %v1293
      %v1295 = vpop.f32.mrf.mxu0
      %1296 = vdwg.mxu0
      %v1297 = vadd.f32 %v416, %v1235
      %v1298 = vadd.f32 %v417, %v1238
      %v1299 = vadd.f32 %v418, %v1243
      %v1300 = vadd.f32 %v419, %v1246
      %v1301 = vadd.f32 %v420, %v1251
      %v1302 = vadd.f32 %v421, %v1254
      %v1303 = vadd.f32 %v422, %v1259
      %v1304 = vadd.f32 %v423, %v1262
      %v1305 = vadd.f32 %v424, %v1267
      %v1306 = vadd.f32 %v425, %v1270
      %v1307 = vadd.f32 %v426, %v1275
      %v1308 = vadd.f32 %v427, %v1278
      %v1309 = vadd.f32 %v428, %v1283
      %v1310 = vadd.f32 %v429, %v1286
      %v1311 = vadd.f32 %v430, %v1291
      %v1312 = vadd.f32 %v431, %v1294
      %v1313 = vmax.f32 %v1297, 0.0
      %v1314 = vmax.f32 %v1298, 0.0
      %v1315 = vmax.f32 %v1299, 0.0
      %v1316 = vmax.f32 %v1300, 0.0
      %v1317 = vmax.f32 %v1301, 0.0
      %v1318 = vmax.f32 %v1302, 0.0
      %v1319 = vmax.f32 %v1303, 0.0
      %v1320 = vmax.f32 %v1304, 0.0
      %v1321 = vmax.f32 %v1305, 0.0
      %v1322 = vmax.f32 %v1306, 0.0
      %v1323 = vmax.f32 %v1307, 0.0
      %v1324 = vmax.f32 %v1308, 0.0
      %v1325 = vmax.f32 %v1309, 0.0
      %v1326 = vmax.f32 %v1310, 0.0
      %v1327 = vmax.f32 %v1311, 0.0
      %v1328 = vmax.f32 %v1312, 0.0
      %v1329 = vpack.c.bf16 %v1314, %v1313
      %v1330 = vpack.c.bf16 %v1316, %v1315
      %v1331 = vpack.c.bf16 %v1318, %v1317
      %v1332 = vpack.c.bf16 %v1320, %v1319
      %v1333 = vpack.c.bf16 %v1322, %v1321
      %v1334 = vpack.c.bf16 %v1324, %v1323
      %v1335 = vpack.c.bf16 %v1326, %v1325
      %v1336 = vpack.c.bf16 %v1328, %v1327
      %s1337 = scalar_lea.vmem %s1, 192
      %v1338 = vld [vmem:[%s1337] sm:$0xf]
      %v1339 = vld [vmem:[%s1337 + $0x4] sm:$0xf]
      %v1340 = vld [vmem:[%s1337 + $0x8] sm:$0xf]
      %v1341 = vld [vmem:[%s1337 + $0xc] sm:$0xf]
      %v1342 = vld [vmem:[%s1337 + $0x10] sm:$0xf]
      %v1343 = vld [vmem:[%s1337 + $0x14] sm:$0xf]
      %v1344 = vld [vmem:[%s1337 + $0x18] sm:$0xf]
      %v1345 = vld [vmem:[%s1337 + $0x1c] sm:$0xf]
      %v1346 = vld [vmem:[%s1337 + $0x20] sm:$0xf]
      %v1347 = vld [vmem:[%s1337 + $0x24] sm:$0xf]
      %v1348 = vld [vmem:[%s1337 + $0x28] sm:$0xf]
      %v1349 = vld [vmem:[%s1337 + $0x2c] sm:$0xf]
      %v1350 = vld [vmem:[%s1337 + $0x30] sm:$0xf]
      %v1351 = vld [vmem:[%s1337 + $0x34] sm:$0xf]
      %v1352 = vld [vmem:[%s1337 + $0x38] sm:$0xf]
      %v1353 = vld [vmem:[%s1337 + $0x3c] sm:$0xf]
      %v1370 = vunpack.c.l.b16 %v1338
      %v1371 = vunpack.c.l.b16 %v1339
      %v1372 = vunpack.c.l.b16 %v1340
      %v1373 = vunpack.c.l.b16 %v1341
      %v1374 = vunpack.c.l.b16 %v1342
      %v1375 = vunpack.c.l.b16 %v1343
      %v1376 = vunpack.c.l.b16 %v1344
      %v1377 = vunpack.c.l.b16 %v1345
      %v1378 = vunpack.c.l.b16 %v1346
      %v1379 = vunpack.c.l.b16 %v1347
      %v1380 = vunpack.c.l.b16 %v1348
      %v1381 = vunpack.c.l.b16 %v1349
      %v1382 = vunpack.c.l.b16 %v1350
      %v1383 = vunpack.c.l.b16 %v1351
      %v1384 = vunpack.c.l.b16 %v1352
      %v1385 = vunpack.c.l.b16 %v1353
      %v1386 = vpack.c.b16 %v1371, %v1370
      %v1387 = vpack.c.b16 %v1373, %v1372
      %v1388 = vpack.c.b16 %v1375, %v1374
      %v1389 = vpack.c.b16 %v1377, %v1376
      %v1390 = vpack.c.b16 %v1379, %v1378
      %v1391 = vpack.c.b16 %v1381, %v1380
      %v1392 = vpack.c.b16 %v1383, %v1382
      %v1393 = vpack.c.b16 %v1385, %v1384
      %1402 = vmatprep.subr.bf16.mxu0 0
      %1403 = vmatpush1.bf16.msra.mxu0 %v1393
      %1404 = vmatprep.subr.bf16.mxu0 0
      %1405 = vmatpush1.bf16.msra.mxu0 %v1392
      %1406 = vmatprep.subr.bf16.mxu0 0
      %1407 = vmatpush1.bf16.msra.mxu0 %v1391
      %1408 = vmatprep.subr.bf16.mxu0 0
      %1409 = vmatpush1.bf16.msra.mxu0 %v1390
      %1410 = vmatprep.subr.bf16.mxu0 0
      %1411 = vmatpush1.bf16.msra.mxu0 %v1389
      %1412 = vmatprep.subr.bf16.mxu0 0
      %1413 = vmatpush1.bf16.msra.mxu0 %v1388
      %1414 = vmatprep.subr.bf16.mxu0 0
      %1415 = vmatpush1.bf16.msra.mxu0 %v1387
      %1416 = vmatprep.subr.bf16.mxu0 0
      %1417 = vmatpush1.bf16.msra.mxu0 %v1386
      %1418 = vmatprep.subr.bf16.mxu0 0
      %1419 = vmatpush2.bf16.msra.mxu0 0
      %1420 = vmatprep.subr.bf16.mxu0 0
      %1421 = vmatpush2.bf16.msra.mxu0 0
      %1422 = vmatprep.subr.bf16.mxu0 0
      %1423 = vmatpush2.bf16.msra.mxu0 0
      %1424 = vmatprep.subr.bf16.mxu0 0
      %1425 = vmatpush2.bf16.msra.mxu0 0
      %1426 = vmatprep.subr.bf16.mxu0 0
      %1427 = vmatpush2.bf16.msra.mxu0 0
      %1428 = vmatprep.subr.bf16.mxu0 0
      %1429 = vmatpush2.bf16.msra.mxu0 0
      %1430 = vmatprep.subr.bf16.mxu0 0
      %1431 = vmatpush2.bf16.msra.mxu0 0
      %1432 = vmatprep.subr.bf16.mxu0 0
      %1433 = vmatpush2.bf16.msra.mxu0 0
      %1434 = vmatprep.mubr.bf16.mxu0 0
      %1435 = vmatmul.mubr.bf16.gmra.mxu0 %v1329
      %v1436 = vpop.f32.mrf.mxu0
      %v1437 = vadd.f32 0.0, %v1436
      %v1438 = vpop.f32.mrf.mxu0
      %v1439 = vpop.f32.mrf.mxu0
      %v1440 = vadd.f32 0.0, %v1439
      %v1441 = vpop.f32.mrf.mxu0
      %1442 = vmatprep.mubr.bf16.mxu0 0
      %1443 = vmatmul.mubr.bf16.gmra.mxu0 %v1330
      %v1444 = vpop.f32.mrf.mxu0
      %v1445 = vadd.f32 0.0, %v1444
      %v1446 = vpop.f32.mrf.mxu0
      %v1447 = vpop.f32.mrf.mxu0
      %v1448 = vadd.f32 0.0, %v1447
      %v1449 = vpop.f32.mrf.mxu0
      %1450 = vmatprep.mubr.bf16.mxu0 0
      %1451 = vmatmul.mubr.bf16.gmra.mxu0 %v1331
      %v1452 = vpop.f32.mrf.mxu0
      %v1453 = vadd.f32 0.0, %v1452
      %v1454 = vpop.f32.mrf.mxu0
      %v1455 = vpop.f32.mrf.mxu0
      %v1456 = vadd.f32 0.0, %v1455
      %v1457 = vpop.f32.mrf.mxu0
      %1458 = vmatprep.mubr.bf16.mxu0 0
      %1459 = vmatmul.mubr.bf16.gmra.mxu0 %v1332
      %v1460 = vpop.f32.mrf.mxu0
      %v1461 = vadd.f32 0.0, %v1460
      %v1462 = vpop.f32.mrf.mxu0
      %v1463 = vpop.f32.mrf.mxu0
      %v1464 = vadd.f32 0.0, %v1463
      %v1465 = vpop.f32.mrf.mxu0
      %1466 = vmatprep.mubr.bf16.mxu0 0
      %1467 = vmatmul.mubr.bf16.gmra.mxu0 %v1333
      %v1468 = vpop.f32.mrf.mxu0
      %v1469 = vadd.f32 0.0, %v1468
      %v1470 = vpop.f32.mrf.mxu0
      %v1471 = vpop.f32.mrf.mxu0
      %v1472 = vadd.f32 0.0, %v1471
      %v1473 = vpop.f32.mrf.mxu0
      %1474 = vmatprep.mubr.bf16.mxu0 0
      %1475 = vmatmul.mubr.bf16.gmra.mxu0 %v1334
      %v1476 = vpop.f32.mrf.mxu0
      %v1477 = vadd.f32 0.0, %v1476
      %v1478 = vpop.f32.mrf.mxu0
      %v1479 = vpop.f32.mrf.mxu0
      %v1480 = vadd.f32 0.0, %v1479
      %v1481 = vpop.f32.mrf.mxu0
      %1482 = vmatprep.mubr.bf16.mxu0 0
      %1483 = vmatmul.mubr.bf16.gmra.mxu0 %v1335
      %v1484 = vpop.f32.mrf.mxu0
      %v1485 = vadd.f32 0.0, %v1484
      %v1486 = vpop.f32.mrf.mxu0
      %v1487 = vpop.f32.mrf.mxu0
      %v1488 = vadd.f32 0.0, %v1487
      %v1489 = vpop.f32.mrf.mxu0
      %1490 = vmatprep.mubr.bf16.mxu0 0
      %1491 = vmatmul.mubr.bf16.gmra.mxu0 %v1336
      %v1492 = vpop.f32.mrf.mxu0
      %v1493 = vadd.f32 0.0, %v1492
      %v1494 = vpop.f32.mrf.mxu0
      %v1495 = vpop.f32.mrf.mxu0
      %v1496 = vadd.f32 0.0, %v1495
      %v1497 = vpop.f32.mrf.mxu0
      %1498 = vdwg.mxu0
      %s1499 = scalar_lea.vmem %s1, 256
      %v1500 = vld [vmem:[%s1499] sm:$0xf]
      %v1501 = vld [vmem:[%s1499 + $0x4] sm:$0xf]
      %v1502 = vld [vmem:[%s1499 + $0x8] sm:$0xf]
      %v1503 = vld [vmem:[%s1499 + $0xc] sm:$0xf]
      %v1504 = vld [vmem:[%s1499 + $0x10] sm:$0xf]
      %v1505 = vld [vmem:[%s1499 + $0x14] sm:$0xf]
      %v1506 = vld [vmem:[%s1499 + $0x18] sm:$0xf]
      %v1507 = vld [vmem:[%s1499 + $0x1c] sm:$0xf]
      %v1508 = vld [vmem:[%s1499 + $0x20] sm:$0xf]
      %v1509 = vld [vmem:[%s1499 + $0x24] sm:$0xf]
      %v1510 = vld [vmem:[%s1499 + $0x28] sm:$0xf]
      %v1511 = vld [vmem:[%s1499 + $0x2c] sm:$0xf]
      %v1512 = vld [vmem:[%s1499 + $0x30] sm:$0xf]
      %v1513 = vld [vmem:[%s1499 + $0x34] sm:$0xf]
      %v1514 = vld [vmem:[%s1499 + $0x38] sm:$0xf]
      %v1515 = vld [vmem:[%s1499 + $0x3c] sm:$0xf]
      %s1516 = scalar_lea.vmem %s1, 320
      %v1517 = vld [vmem:[%s1516] sm:$0xf]
      %v1518 = vld [vmem:[%s1516 + $0x4] sm:$0xf]
      %v1519 = vld [vmem:[%s1516 + $0x8] sm:$0xf]
      %v1520 = vld [vmem:[%s1516 + $0xc] sm:$0xf]
      %v1521 = vld [vmem:[%s1516 + $0x10] sm:$0xf]
      %v1522 = vld [vmem:[%s1516 + $0x14] sm:$0xf]
      %v1523 = vld [vmem:[%s1516 + $0x18] sm:$0xf]
      %v1524 = vld [vmem:[%s1516 + $0x1c] sm:$0xf]
      %v1525 = vld [vmem:[%s1516 + $0x20] sm:$0xf]
      %v1526 = vld [vmem:[%s1516 + $0x24] sm:$0xf]
      %v1527 = vld [vmem:[%s1516 + $0x28] sm:$0xf]
      %v1528 = vld [vmem:[%s1516 + $0x2c] sm:$0xf]
      %v1529 = vld [vmem:[%s1516 + $0x30] sm:$0xf]
      %v1530 = vld [vmem:[%s1516 + $0x34] sm:$0xf]
      %v1531 = vld [vmem:[%s1516 + $0x38] sm:$0xf]
      %v1532 = vld [vmem:[%s1516 + $0x3c] sm:$0xf]
      %v1549 = vunpack.c.l.b16 %v1517
      %v1550 = vunpack.c.l.b16 %v1518
      %v1551 = vunpack.c.l.b16 %v1519
      %v1552 = vunpack.c.l.b16 %v1520
      %v1553 = vunpack.c.l.b16 %v1521
      %v1554 = vunpack.c.l.b16 %v1522
      %v1555 = vunpack.c.l.b16 %v1523
      %v1556 = vunpack.c.l.b16 %v1524
      %v1557 = vunpack.c.l.b16 %v1525
      %v1558 = vunpack.c.l.b16 %v1526
      %v1559 = vunpack.c.l.b16 %v1527
      %v1560 = vunpack.c.l.b16 %v1528
      %v1561 = vunpack.c.l.b16 %v1529
      %v1562 = vunpack.c.l.b16 %v1530
      %v1563 = vunpack.c.l.b16 %v1531
      %v1564 = vunpack.c.l.b16 %v1532
      %v1565 = vpack.c.b16 %v1550, %v1549
      %v1566 = vpack.c.b16 %v1552, %v1551
      %v1567 = vpack.c.b16 %v1554, %v1553
      %v1568 = vpack.c.b16 %v1556, %v1555
      %v1569 = vpack.c.b16 %v1558, %v1557
      %v1570 = vpack.c.b16 %v1560, %v1559
      %v1571 = vpack.c.b16 %v1562, %v1561
      %v1572 = vpack.c.b16 %v1564, %v1563
      %1581 = vmatprep.subr.bf16.mxu0 0
      %1582 = vmatpush1.bf16.msra.mxu0 %v1572
      %1583 = vmatprep.subr.bf16.mxu0 0
      %1584 = vmatpush1.bf16.msra.mxu0 %v1571
      %1585 = vmatprep.subr.bf16.mxu0 0
      %1586 = vmatpush1.bf16.msra.mxu0 %v1570
      %1587 = vmatprep.subr.bf16.mxu0 0
      %1588 = vmatpush1.bf16.msra.mxu0 %v1569
      %1589 = vmatprep.subr.bf16.mxu0 0
      %1590 = vmatpush1.bf16.msra.mxu0 %v1568
      %1591 = vmatprep.subr.bf16.mxu0 0
      %1592 = vmatpush1.bf16.msra.mxu0 %v1567
      %1593 = vmatprep.subr.bf16.mxu0 0
      %1594 = vmatpush1.bf16.msra.mxu0 %v1566
      %1595 = vmatprep.subr.bf16.mxu0 0
      %1596 = vmatpush1.bf16.msra.mxu0 %v1565
      %1597 = vmatprep.subr.bf16.mxu0 0
      %1598 = vmatpush2.bf16.msra.mxu0 0
      %1599 = vmatprep.subr.bf16.mxu0 0
      %1600 = vmatpush2.bf16.msra.mxu0 0
      %1601 = vmatprep.subr.bf16.mxu0 0
      %1602 = vmatpush2.bf16.msra.mxu0 0
      %1603 = vmatprep.subr.bf16.mxu0 0
      %1604 = vmatpush2.bf16.msra.mxu0 0
      %1605 = vmatprep.subr.bf16.mxu0 0
      %1606 = vmatpush2.bf16.msra.mxu0 0
      %1607 = vmatprep.subr.bf16.mxu0 0
      %1608 = vmatpush2.bf16.msra.mxu0 0
      %1609 = vmatprep.subr.bf16.mxu0 0
      %1610 = vmatpush2.bf16.msra.mxu0 0
      %1611 = vmatprep.subr.bf16.mxu0 0
      %1612 = vmatpush2.bf16.msra.mxu0 0
      %1613 = vmatprep.mubr.bf16.mxu0 0
      %1614 = vmatmul.mubr.bf16.gmra.mxu0 %v1329
      %v1615 = vpop.f32.mrf.mxu0
      %v1616 = vadd.f32 0.0, %v1615
      %v1617 = vpop.f32.mrf.mxu0
      %v1618 = vpop.f32.mrf.mxu0
      %v1619 = vadd.f32 0.0, %v1618
      %v1620 = vpop.f32.mrf.mxu0
      %1621 = vmatprep.mubr.bf16.mxu0 0
      %1622 = vmatmul.mubr.bf16.gmra.mxu0 %v1330
      %v1623 = vpop.f32.mrf.mxu0
      %v1624 = vadd.f32 0.0, %v1623
      %v1625 = vpop.f32.mrf.mxu0
      %v1626 = vpop.f32.mrf.mxu0
      %v1627 = vadd.f32 0.0, %v1626
      %v1628 = vpop.f32.mrf.mxu0
      %1629 = vmatprep.mubr.bf16.mxu0 0
      %1630 = vmatmul.mubr.bf16.gmra.mxu0 %v1331
      %v1631 = vpop.f32.mrf.mxu0
      %v1632 = vadd.f32 0.0, %v1631
      %v1633 = vpop.f32.mrf.mxu0
      %v1634 = vpop.f32.mrf.mxu0
      %v1635 = vadd.f32 0.0, %v1634
      %v1636 = vpop.f32.mrf.mxu0
      %1637 = vmatprep.mubr.bf16.mxu0 0
      %1638 = vmatmul.mubr.bf16.gmra.mxu0 %v1332
      %v1639 = vpop.f32.mrf.mxu0
      %v1640 = vadd.f32 0.0, %v1639
      %v1641 = vpop.f32.mrf.mxu0
      %v1642 = vpop.f32.mrf.mxu0
      %v1643 = vadd.f32 0.0, %v1642
      %v1644 = vpop.f32.mrf.mxu0
      %1645 = vmatprep.mubr.bf16.mxu0 0
      %1646 = vmatmul.mubr.bf16.gmra.mxu0 %v1333
      %v1647 = vpop.f32.mrf.mxu0
      %v1648 = vadd.f32 0.0, %v1647
      %v1649 = vpop.f32.mrf.mxu0
      %v1650 = vpop.f32.mrf.mxu0
      %v1651 = vadd.f32 0.0, %v1650
      %v1652 = vpop.f32.mrf.mxu0
      %1653 = vmatprep.mubr.bf16.mxu0 0
      %1654 = vmatmul.mubr.bf16.gmra.mxu0 %v1334
      %v1655 = vpop.f32.mrf.mxu0
      %v1656 = vadd.f32 0.0, %v1655
      %v1657 = vpop.f32.mrf.mxu0
      %v1658 = vpop.f32.mrf.mxu0
      %v1659 = vadd.f32 0.0, %v1658
      %v1660 = vpop.f32.mrf.mxu0
      %1661 = vmatprep.mubr.bf16.mxu0 0
      %1662 = vmatmul.mubr.bf16.gmra.mxu0 %v1335
      %v1663 = vpop.f32.mrf.mxu0
      %v1664 = vadd.f32 0.0, %v1663
      %v1665 = vpop.f32.mrf.mxu0
      %v1666 = vpop.f32.mrf.mxu0
      %v1667 = vadd.f32 0.0, %v1666
      %v1668 = vpop.f32.mrf.mxu0
      %1669 = vmatprep.mubr.bf16.mxu0 0
      %1670 = vmatmul.mubr.bf16.gmra.mxu0 %v1336
      %v1671 = vpop.f32.mrf.mxu0
      %v1672 = vadd.f32 0.0, %v1671
      %v1673 = vpop.f32.mrf.mxu0
      %v1674 = vpop.f32.mrf.mxu0
      %v1675 = vadd.f32 0.0, %v1674
      %v1676 = vpop.f32.mrf.mxu0
      %1677 = vdwg.mxu0
      %v1678 = vrot.slane %v1437, 7
      %v1679 = vrot.slane %v1440, 7
      %v1680 = vrot.slane %v1445, 7
      %v1681 = vrot.slane %v1448, 7
      %v1682 = vrot.slane %v1453, 7
      %v1683 = vrot.slane %v1456, 7
      %v1684 = vrot.slane %v1461, 7
      %v1685 = vrot.slane %v1464, 7
      %v1686 = vrot.slane %v1469, 7
      %v1687 = vrot.slane %v1472, 7
      %v1688 = vrot.slane %v1477, 7
      %v1689 = vrot.slane %v1480, 7
      %v1690 = vrot.slane %v1485, 7
      %v1691 = vrot.slane %v1488, 7
      %v1692 = vrot.slane %v1493, 7
      %v1693 = vrot.slane %v1496, 7
      %v1694 = vsel %vm812, %v1692, %v1693
      %v1695 = vsel %vm812, %v1691, %v1692
      %v1696 = vsel %vm812, %v1690, %v1691
      %v1697 = vsel %vm812, %v1689, %v1690
      %v1698 = vsel %vm812, %v1688, %v1689
      %v1699 = vsel %vm812, %v1687, %v1688
      %v1700 = vsel %vm812, %v1686, %v1687
      %v1701 = vsel %vm812, %v1685, %v1686
      %v1702 = vsel %vm812, %v1684, %v1685
      %v1703 = vsel %vm812, %v1683, %v1684
      %v1704 = vsel %vm812, %v1682, %v1683
      %v1705 = vsel %vm812, %v1681, %v1682
      %v1706 = vsel %vm812, %v1680, %v1681
      %v1707 = vsel %vm812, %v1679, %v1680
      %v1708 = vsel %vm812, %v1678, %v1679
      %v1709 = vsel %vm812, %v1693, %v1678
      %v1710 = vsel %vm845, %v1709, 0.0
      %v1711 = vsel %vm846, %v1708, 0.0
      %v1712 = vsel %vm847, %v1707, 0.0
      %v1713 = vsel %vm848, %v1706, 0.0
      %v1714 = vsel %vm849, %v1705, 0.0
      %v1715 = vsel %vm850, %v1704, 0.0
      %v1716 = vsel %vm851, %v1703, 0.0
      %v1717 = vsel %vm852, %v1702, 0.0
      %v1718 = vsel %vm853, %v1701, 0.0
      %v1719 = vsel %vm854, %v1700, 0.0
      %v1720 = vsel %vm855, %v1699, 0.0
      %v1721 = vsel %vm856, %v1698, 0.0
      %v1722 = vsel %vm857, %v1697, 0.0
      %v1723 = vsel %vm858, %v1696, 0.0
      %v1724 = vsel %vm859, %v1695, 0.0
      %v1725 = vsel %vm860, %v1694, 0.0
      %v1742 = vunpack.c.l.b16 %v1500
      %v1743 = vunpack.c.l.b16 %v1501
      %v1744 = vunpack.c.l.b16 %v1502
      %v1745 = vunpack.c.l.b16 %v1503
      %v1746 = vunpack.c.l.b16 %v1504
      %v1747 = vunpack.c.l.b16 %v1505
      %v1748 = vunpack.c.l.b16 %v1506
      %v1749 = vunpack.c.l.b16 %v1507
      %v1750 = vunpack.c.l.b16 %v1508
      %v1751 = vunpack.c.l.b16 %v1509
      %v1752 = vunpack.c.l.b16 %v1510
      %v1753 = vunpack.c.l.b16 %v1511
      %v1754 = vunpack.c.l.b16 %v1512
      %v1755 = vunpack.c.l.b16 %v1513
      %v1756 = vunpack.c.l.b16 %v1514
      %v1757 = vunpack.c.l.b16 %v1515
      %v1758 = vpack.c.b16 %v1743, %v1742
      %v1759 = vpack.c.b16 %v1745, %v1744
      %v1760 = vpack.c.b16 %v1747, %v1746
      %v1761 = vpack.c.b16 %v1749, %v1748
      %v1762 = vpack.c.b16 %v1751, %v1750
      %v1763 = vpack.c.b16 %v1753, %v1752
      %v1764 = vpack.c.b16 %v1755, %v1754
      %v1765 = vpack.c.b16 %v1757, %v1756
      %1774 = vmatprep.subr.bf16.mxu0 0
      %1775 = vmatpush1.bf16.msra.mxu0 %v1765
      %1776 = vmatprep.subr.bf16.mxu0 0
      %1777 = vmatpush1.bf16.msra.mxu0 %v1764
      %1778 = vmatprep.subr.bf16.mxu0 0
      %1779 = vmatpush1.bf16.msra.mxu0 %v1763
      %1780 = vmatprep.subr.bf16.mxu0 0
      %1781 = vmatpush1.bf16.msra.mxu0 %v1762
      %1782 = vmatprep.subr.bf16.mxu0 0
      %1783 = vmatpush1.bf16.msra.mxu0 %v1761
      %1784 = vmatprep.subr.bf16.mxu0 0
      %1785 = vmatpush1.bf16.msra.mxu0 %v1760
      %1786 = vmatprep.subr.bf16.mxu0 0
      %1787 = vmatpush1.bf16.msra.mxu0 %v1759
      %1788 = vmatprep.subr.bf16.mxu0 0
      %1789 = vmatpush1.bf16.msra.mxu0 %v1758
      %1790 = vmatprep.subr.bf16.mxu0 0
      %1791 = vmatpush2.bf16.msra.mxu0 0
      %1792 = vmatprep.subr.bf16.mxu0 0
      %1793 = vmatpush2.bf16.msra.mxu0 0
      %1794 = vmatprep.subr.bf16.mxu0 0
      %1795 = vmatpush2.bf16.msra.mxu0 0
      %1796 = vmatprep.subr.bf16.mxu0 0
      %1797 = vmatpush2.bf16.msra.mxu0 0
      %1798 = vmatprep.subr.bf16.mxu0 0
      %1799 = vmatpush2.bf16.msra.mxu0 0
      %1800 = vmatprep.subr.bf16.mxu0 0
      %1801 = vmatpush2.bf16.msra.mxu0 0
      %1802 = vmatprep.subr.bf16.mxu0 0
      %1803 = vmatpush2.bf16.msra.mxu0 0
      %1804 = vmatprep.subr.bf16.mxu0 0
      %1805 = vmatpush2.bf16.msra.mxu0 0
      %1806 = vmatprep.mubr.bf16.mxu0 0
      %1807 = vmatmul.mubr.bf16.gmra.mxu0 %v1329
      %v1808 = vpop.f32.mrf.mxu0
      %v1809 = vadd.f32 %v1710, %v1808
      %v1810 = vpop.f32.mrf.mxu0
      %v1811 = vpop.f32.mrf.mxu0
      %v1812 = vadd.f32 %v1711, %v1811
      %v1813 = vpop.f32.mrf.mxu0
      %1814 = vmatprep.mubr.bf16.mxu0 0
      %1815 = vmatmul.mubr.bf16.gmra.mxu0 %v1330
      %v1816 = vpop.f32.mrf.mxu0
      %v1817 = vadd.f32 %v1712, %v1816
      %v1818 = vpop.f32.mrf.mxu0
      %v1819 = vpop.f32.mrf.mxu0
      %v1820 = vadd.f32 %v1713, %v1819
      %v1821 = vpop.f32.mrf.mxu0
      %1822 = vmatprep.mubr.bf16.mxu0 0
      %1823 = vmatmul.mubr.bf16.gmra.mxu0 %v1331
      %v1824 = vpop.f32.mrf.mxu0
      %v1825 = vadd.f32 %v1714, %v1824
      %v1826 = vpop.f32.mrf.mxu0
      %v1827 = vpop.f32.mrf.mxu0
      %v1828 = vadd.f32 %v1715, %v1827
      %v1829 = vpop.f32.mrf.mxu0
      %1830 = vmatprep.mubr.bf16.mxu0 0
      %1831 = vmatmul.mubr.bf16.gmra.mxu0 %v1332
      %v1832 = vpop.f32.mrf.mxu0
      %v1833 = vadd.f32 %v1716, %v1832
      %v1834 = vpop.f32.mrf.mxu0
      %v1835 = vpop.f32.mrf.mxu0
      %v1836 = vadd.f32 %v1717, %v1835
      %v1837 = vpop.f32.mrf.mxu0
      %1838 = vmatprep.mubr.bf16.mxu0 0
      %1839 = vmatmul.mubr.bf16.gmra.mxu0 %v1333
      %v1840 = vpop.f32.mrf.mxu0
      %v1841 = vadd.f32 %v1718, %v1840
      %v1842 = vpop.f32.mrf.mxu0
      %v1843 = vpop.f32.mrf.mxu0
      %v1844 = vadd.f32 %v1719, %v1843
      %v1845 = vpop.f32.mrf.mxu0
      %1846 = vmatprep.mubr.bf16.mxu0 0
      %1847 = vmatmul.mubr.bf16.gmra.mxu0 %v1334
      %v1848 = vpop.f32.mrf.mxu0
      %v1849 = vadd.f32 %v1720, %v1848
      %v1850 = vpop.f32.mrf.mxu0
      %v1851 = vpop.f32.mrf.mxu0
      %v1852 = vadd.f32 %v1721, %v1851
      %v1853 = vpop.f32.mrf.mxu0
      %1854 = vmatprep.mubr.bf16.mxu0 0
      %1855 = vmatmul.mubr.bf16.gmra.mxu0 %v1335
      %v1856 = vpop.f32.mrf.mxu0
      %v1857 = vadd.f32 %v1722, %v1856
      %v1858 = vpop.f32.mrf.mxu0
      %v1859 = vpop.f32.mrf.mxu0
      %v1860 = vadd.f32 %v1723, %v1859
      %v1861 = vpop.f32.mrf.mxu0
      %1862 = vmatprep.mubr.bf16.mxu0 0
      %1863 = vmatmul.mubr.bf16.gmra.mxu0 %v1336
      %v1864 = vpop.f32.mrf.mxu0
      %v1865 = vadd.f32 %v1724, %v1864
      %v1866 = vpop.f32.mrf.mxu0
      %v1867 = vpop.f32.mrf.mxu0
      %v1868 = vadd.f32 %v1725, %v1867
      %v1869 = vpop.f32.mrf.mxu0
      %1870 = vdwg.mxu0
      %v1871 = vrot.slane %v1616, 1
      %v1872 = vrot.slane %v1619, 1
      %v1873 = vrot.slane %v1624, 1
      %v1874 = vrot.slane %v1627, 1
      %v1875 = vrot.slane %v1632, 1
      %v1876 = vrot.slane %v1635, 1
      %v1877 = vrot.slane %v1640, 1
      %v1878 = vrot.slane %v1643, 1
      %v1879 = vrot.slane %v1648, 1
      %v1880 = vrot.slane %v1651, 1
      %v1881 = vrot.slane %v1656, 1
      %v1882 = vrot.slane %v1659, 1
      %v1883 = vrot.slane %v1664, 1
      %v1884 = vrot.slane %v1667, 1
      %v1885 = vrot.slane %v1672, 1
      %v1886 = vrot.slane %v1675, 1
      %v1887 = vsel %vm1038, %v1885, %v1886
      %v1888 = vsel %vm1038, %v1884, %v1885
      %v1889 = vsel %vm1038, %v1883, %v1884
      %v1890 = vsel %vm1038, %v1882, %v1883
      %v1891 = vsel %vm1038, %v1881, %v1882
      %v1892 = vsel %vm1038, %v1880, %v1881
      %v1893 = vsel %vm1038, %v1879, %v1880
      %v1894 = vsel %vm1038, %v1878, %v1879
      %v1895 = vsel %vm1038, %v1877, %v1878
      %v1896 = vsel %vm1038, %v1876, %v1877
      %v1897 = vsel %vm1038, %v1875, %v1876
      %v1898 = vsel %vm1038, %v1874, %v1875
      %v1899 = vsel %vm1038, %v1873, %v1874
      %v1900 = vsel %vm1038, %v1872, %v1873
      %v1901 = vsel %vm1038, %v1871, %v1872
      %v1902 = vsel %vm1038, %v1886, %v1871
      %v1903 = vsel %vm1071, %v1901, 0.0
      %v1904 = vsel %vm1072, %v1900, 0.0
      %v1905 = vsel %vm1073, %v1899, 0.0
      %v1906 = vsel %vm1074, %v1898, 0.0
      %v1907 = vsel %vm1075, %v1897, 0.0
      %v1908 = vsel %vm1076, %v1896, 0.0
      %v1909 = vsel %vm1077, %v1895, 0.0
      %v1910 = vsel %vm1078, %v1894, 0.0
      %v1911 = vsel %vm1079, %v1893, 0.0
      %v1912 = vsel %vm1080, %v1892, 0.0
      %v1913 = vsel %vm1081, %v1891, 0.0
      %v1914 = vsel %vm1082, %v1890, 0.0
      %v1915 = vsel %vm1083, %v1889, 0.0
      %v1916 = vsel %vm1084, %v1888, 0.0
      %v1917 = vsel %vm1085, %v1887, 0.0
      %v1918 = vsel %vm1086, %v1902, 0.0
      %v1919 = vadd.f32 %v1809, %v1903
      %v1920 = vadd.f32 %v1812, %v1904
      %v1921 = vadd.f32 %v1817, %v1905
      %v1922 = vadd.f32 %v1820, %v1906
      %v1923 = vadd.f32 %v1825, %v1907
      %v1924 = vadd.f32 %v1828, %v1908
      %v1925 = vadd.f32 %v1833, %v1909
      %v1926 = vadd.f32 %v1836, %v1910
      %v1927 = vadd.f32 %v1841, %v1911
      %v1928 = vadd.f32 %v1844, %v1912
      %v1929 = vadd.f32 %v1849, %v1913
      %v1930 = vadd.f32 %v1852, %v1914
      %v1931 = vadd.f32 %v1857, %v1915
      %v1932 = vadd.f32 %v1860, %v1916
      %v1933 = vadd.f32 %v1865, %v1917
      %v1934 = vadd.f32 %v1868, %v1918
      %v1935 = vmax.f32 %v1919, 0.0
      %v1936 = vmax.f32 %v1920, 0.0
      %v1937 = vmax.f32 %v1921, 0.0
      %v1938 = vmax.f32 %v1922, 0.0
      %v1939 = vmax.f32 %v1923, 0.0
      %v1940 = vmax.f32 %v1924, 0.0
      %v1941 = vmax.f32 %v1925, 0.0
      %v1942 = vmax.f32 %v1926, 0.0
      %v1943 = vmax.f32 %v1927, 0.0
      %v1944 = vmax.f32 %v1928, 0.0
      %v1945 = vmax.f32 %v1929, 0.0
      %v1946 = vmax.f32 %v1930, 0.0
      %v1947 = vmax.f32 %v1931, 0.0
      %v1948 = vmax.f32 %v1932, 0.0
      %v1949 = vmax.f32 %v1933, 0.0
      %v1950 = vmax.f32 %v1934, 0.0
      %v1951 = vpack.c.bf16 %v1936, %v1935
      %v1952 = vpack.c.bf16 %v1938, %v1937
      %v1953 = vpack.c.bf16 %v1940, %v1939
      %v1954 = vpack.c.bf16 %v1942, %v1941
      %v1955 = vpack.c.bf16 %v1944, %v1943
      %v1956 = vpack.c.bf16 %v1946, %v1945
      %v1957 = vpack.c.bf16 %v1948, %v1947
      %v1958 = vpack.c.bf16 %v1950, %v1949
      %s1959 = scalar_lea.vmem %s2, 32
      %v1960 = vld [vmem:[%s1959] sm:$0xf]
      %v1961 = vld [vmem:[%s1959 + $0x4] sm:$0xf]
      %v1962 = vld [vmem:[%s1959 + $0x8] sm:$0xf]
      %v1963 = vld [vmem:[%s1959 + $0xc] sm:$0xf]
      %v1964 = vld [vmem:[%s1959 + $0x10] sm:$0xf]
      %v1965 = vld [vmem:[%s1959 + $0x14] sm:$0xf]
      %v1966 = vld [vmem:[%s1959 + $0x18] sm:$0xf]
      %v1967 = vld [vmem:[%s1959 + $0x1c] sm:$0xf]
      %v1976 = vunpack.c.l.b16 %v1960
      %v1977 = vunpack.c.l.b16 %v1961
      %v1978 = vunpack.c.l.b16 %v1962
      %v1979 = vunpack.c.l.b16 %v1963
      %v1980 = vunpack.c.l.b16 %v1964
      %v1981 = vunpack.c.l.b16 %v1965
      %v1982 = vunpack.c.l.b16 %v1966
      %v1983 = vunpack.c.l.b16 %v1967
      %v1984 = vpack.c.b16 %v1977, %v1976
      %v1985 = vpack.c.b16 %v1979, %v1978
      %v1986 = vpack.c.b16 %v1981, %v1980
      %v1987 = vpack.c.b16 %v1983, %v1982
      %v1993 = vsel %vm1175, %v1951, 0
      %v1996 = vsel %vm1175, %v1952, 0
      %v1999 = vsel %vm1175, %v1953, 0
      %v2002 = vsel %vm1175, %v1954, 0
      %v2005 = vsel %vm1175, %v1955, 0
      %v2008 = vsel %vm1175, %v1956, 0
      %v2011 = vsel %vm1175, %v1957, 0
      %v2014 = vsel %vm1175, %v1958, 0
      %2016 = vmatprep.subr.bf16.mxu0 0
      %2017 = vmatpush1.bf16.msra.mxu0 0
      %2018 = vmatprep.subr.bf16.mxu0 0
      %2019 = vmatpush1.bf16.msra.mxu0 0
      %2020 = vmatprep.subr.bf16.mxu0 0
      %2021 = vmatpush1.bf16.msra.mxu0 0
      %2022 = vmatprep.subr.bf16.mxu0 0
      %2023 = vmatpush1.bf16.msra.mxu0 0
      %2024 = vmatprep.subr.bf16.mxu0 0
      %2025 = vmatpush1.bf16.msra.mxu0 %v1987
      %2026 = vmatprep.subr.bf16.mxu0 0
      %2027 = vmatpush1.bf16.msra.mxu0 %v1986
      %2028 = vmatprep.subr.bf16.mxu0 0
      %2029 = vmatpush1.bf16.msra.mxu0 %v1985
      %2030 = vmatprep.subr.bf16.mxu0 0
      %2031 = vmatpush1.bf16.msra.mxu0 %v1984
      %2032 = vmatprep.subr.bf16.mxu0 0
      %2033 = vmatpush2.bf16.msra.mxu0 0
      %2034 = vmatprep.subr.bf16.mxu0 0
      %2035 = vmatpush2.bf16.msra.mxu0 0
      %2036 = vmatprep.subr.bf16.mxu0 0
      %2037 = vmatpush2.bf16.msra.mxu0 0
      %2038 = vmatprep.subr.bf16.mxu0 0
      %2039 = vmatpush2.bf16.msra.mxu0 0
      %2040 = vmatprep.subr.bf16.mxu0 0
      %2041 = vmatpush2.bf16.msra.mxu0 0
      %2042 = vmatprep.subr.bf16.mxu0 0
      %2043 = vmatpush2.bf16.msra.mxu0 0
      %2044 = vmatprep.subr.bf16.mxu0 0
      %2045 = vmatpush2.bf16.msra.mxu0 0
      %2046 = vmatprep.subr.bf16.mxu0 0
      %2047 = vmatpush2.bf16.msra.mxu0 0
      %2048 = vmatprep.mubr.bf16.mxu0 0
      %2049 = vmatmul.mubr.bf16.gmra.mxu0 %v1993
      %v2050 = vpop.f32.mrf.mxu0
      %v2051 = vadd.f32 0.0, %v2050
      %v2052 = vpop.f32.mrf.mxu0
      %v2053 = vpop.f32.mrf.mxu0
      %v2054 = vadd.f32 0.0, %v2053
      %v2055 = vpop.f32.mrf.mxu0
      %2056 = vmatprep.mubr.bf16.mxu0 0
      %2057 = vmatmul.mubr.bf16.gmra.mxu0 %v1996
      %v2058 = vpop.f32.mrf.mxu0
      %v2059 = vadd.f32 0.0, %v2058
      %v2060 = vpop.f32.mrf.mxu0
      %v2061 = vpop.f32.mrf.mxu0
      %v2062 = vadd.f32 0.0, %v2061
      %v2063 = vpop.f32.mrf.mxu0
      %2064 = vmatprep.mubr.bf16.mxu0 0
      %2065 = vmatmul.mubr.bf16.gmra.mxu0 %v1999
      %v2066 = vpop.f32.mrf.mxu0
      %v2067 = vadd.f32 0.0, %v2066
      %v2068 = vpop.f32.mrf.mxu0
      %v2069 = vpop.f32.mrf.mxu0
      %v2070 = vadd.f32 0.0, %v2069
      %v2071 = vpop.f32.mrf.mxu0
      %2072 = vmatprep.mubr.bf16.mxu0 0
      %2073 = vmatmul.mubr.bf16.gmra.mxu0 %v2002
      %v2074 = vpop.f32.mrf.mxu0
      %v2075 = vadd.f32 0.0, %v2074
      %v2076 = vpop.f32.mrf.mxu0
      %v2077 = vpop.f32.mrf.mxu0
      %v2078 = vadd.f32 0.0, %v2077
      %v2079 = vpop.f32.mrf.mxu0
      %2080 = vmatprep.mubr.bf16.mxu0 0
      %2081 = vmatmul.mubr.bf16.gmra.mxu0 %v2005
      %v2082 = vpop.f32.mrf.mxu0
      %v2083 = vadd.f32 0.0, %v2082
      %v2084 = vpop.f32.mrf.mxu0
      %v2085 = vpop.f32.mrf.mxu0
      %v2086 = vadd.f32 0.0, %v2085
      %v2087 = vpop.f32.mrf.mxu0
      %2088 = vmatprep.mubr.bf16.mxu0 0
      %2089 = vmatmul.mubr.bf16.gmra.mxu0 %v2008
      %v2090 = vpop.f32.mrf.mxu0
      %v2091 = vadd.f32 0.0, %v2090
      %v2092 = vpop.f32.mrf.mxu0
      %v2093 = vpop.f32.mrf.mxu0
      %v2094 = vadd.f32 0.0, %v2093
      %v2095 = vpop.f32.mrf.mxu0
      %2096 = vmatprep.mubr.bf16.mxu0 0
      %2097 = vmatmul.mubr.bf16.gmra.mxu0 %v2011
      %v2098 = vpop.f32.mrf.mxu0
      %v2099 = vadd.f32 0.0, %v2098
      %v2100 = vpop.f32.mrf.mxu0
      %v2101 = vpop.f32.mrf.mxu0
      %v2102 = vadd.f32 0.0, %v2101
      %v2103 = vpop.f32.mrf.mxu0
      %2104 = vmatprep.mubr.bf16.mxu0 0
      %2105 = vmatmul.mubr.bf16.gmra.mxu0 %v2014
      %v2106 = vpop.f32.mrf.mxu0
      %v2107 = vadd.f32 0.0, %v2106
      %v2108 = vpop.f32.mrf.mxu0
      %v2109 = vpop.f32.mrf.mxu0
      %v2110 = vadd.f32 0.0, %v2109
      %v2111 = vpop.f32.mrf.mxu0
      %2112 = vdwg.mxu0
      %v2113 = vadd.f32 %v1297, %v2051
      %v2114 = vadd.f32 %v1298, %v2054
      %v2115 = vadd.f32 %v1299, %v2059
      %v2116 = vadd.f32 %v1300, %v2062
      %v2117 = vadd.f32 %v1301, %v2067
      %v2118 = vadd.f32 %v1302, %v2070
      %v2119 = vadd.f32 %v1303, %v2075
      %v2120 = vadd.f32 %v1304, %v2078
      %v2121 = vadd.f32 %v1305, %v2083
      %v2122 = vadd.f32 %v1306, %v2086
      %v2123 = vadd.f32 %v1307, %v2091
      %v2124 = vadd.f32 %v1308, %v2094
      %v2125 = vadd.f32 %v1309, %v2099
      %v2126 = vadd.f32 %v1310, %v2102
      %v2127 = vadd.f32 %v1311, %v2107
      %v2128 = vadd.f32 %v1312, %v2110
      %v2129 = vmax.f32 %v2113, 0.0
      %v2130 = vmax.f32 %v2114, 0.0
      %v2131 = vmax.f32 %v2115, 0.0
      %v2132 = vmax.f32 %v2116, 0.0
      %v2133 = vmax.f32 %v2117, 0.0
      %v2134 = vmax.f32 %v2118, 0.0
      %v2135 = vmax.f32 %v2119, 0.0
      %v2136 = vmax.f32 %v2120, 0.0
      %v2137 = vmax.f32 %v2121, 0.0
      %v2138 = vmax.f32 %v2122, 0.0
      %v2139 = vmax.f32 %v2123, 0.0
      %v2140 = vmax.f32 %v2124, 0.0
      %v2141 = vmax.f32 %v2125, 0.0
      %v2142 = vmax.f32 %v2126, 0.0
      %v2143 = vmax.f32 %v2127, 0.0
      %v2144 = vmax.f32 %v2128, 0.0
      %2145 = vst [vmem:[%s172] sm:$0xff] %v2129
      %2146 = vst [vmem:[%s172 + $0x8] sm:$0xff] %v2130
      %2147 = vst [vmem:[%s172 + $0x10] sm:$0xff] %v2131
      %2148 = vst [vmem:[%s172 + $0x18] sm:$0xff] %v2132
      %2149 = vst [vmem:[%s172 + $0x20] sm:$0xff] %v2133
      %2150 = vst [vmem:[%s172 + $0x28] sm:$0xff] %v2134
      %2151 = vst [vmem:[%s172 + $0x30] sm:$0xff] %v2135
      %2152 = vst [vmem:[%s172 + $0x38] sm:$0xff] %v2136
      %2153 = vst [vmem:[%s172 + $0x40] sm:$0xff] %v2137
      %2154 = vst [vmem:[%s172 + $0x48] sm:$0xff] %v2138
      %2155 = vst [vmem:[%s172 + $0x50] sm:$0xff] %v2139
      %2156 = vst [vmem:[%s172 + $0x58] sm:$0xff] %v2140
      %2157 = vst [vmem:[%s172 + $0x60] sm:$0xff] %v2141
      %2158 = vst [vmem:[%s172 + $0x68] sm:$0xff] %v2142
      %2159 = vst [vmem:[%s172 + $0x70] sm:$0xff] %v2143
      %2160 = vst [vmem:[%s172 + $0x78] sm:$0xff] %v2144
      %s2161 = smul.u32 16, %s14
      %p2162 = scmp.lt.s32.totalorder %s2161, 31
      %s2163 = scalar_select %p2162, %s2161, 31
      %s2164 = smul.addr %s2163, 8
      %s2165 = scalar_lea.vmem %s3, %s2164
      // Predicated region
      $region33: #{residual_stack.1} parent=31 // pred_check
        %p2166 = pneg %p100
      $region34: #{residual_stack.1} parent=31 // pred_check_branch
        %2168 = sbr.rel (%p2166) target = $region36
      $region35: #{residual_stack.1} parent=31 // pred_region
        %s2169 = smul.u32 16, %s14
      $region36: #{residual_stack.1} parent=31 // pred_fallthru
        _
    $region32: #{residual_stack.1} parent=5 // pred_fallthru
      _
    %p2170 = scmp.le.s32.totalorder 2, %s9
    // Predicated region
    $region37: #{residual_stack.1} parent=5 // pred_check
      %p2171 = pneg %p2170
    $region38: #{residual_stack.1} parent=5 // pred_check_branch
      %2173 = sbr.rel (%p2171) target = $region40
    $region39: #{residual_stack.1} parent=5 // pred_region
      %s2174 = ssub.s32 %s9, 2
      // Predicated region
      $region41: #{residual_stack.1} parent=39 // pred_check
        %p2175 = pneg %p106
      $region42: #{residual_stack.1} parent=39 // pred_check_branch
        %2177 = sbr.rel (%p2175) target = $region44
      $region43: #{residual_stack.1} parent=39 // pred_region
        %s2178 = smul.u32 16, %s15
        %p2179 = scmp.lt.s32.totalorder %s2178, 31
        %s2180 = scalar_select %p2179, %s2178, 31
        %s2181 = smul.addr %s2180, 8
        %s2182 = scalar_lea.vmem %s3, %s2181
      $region44: #{residual_stack.1} parent=39 // pred_fallthru
        _
    $region40: #{residual_stack.1} parent=5 // pred_fallthru
      _
  $region6: #{residual_stack.1} parent=0 // loop_footer
    %s13 = sadd.s32 1, %s9
  $region7: #{residual_stack.1} parent=0 // loop_footer_branch
    %8 = sbr.rel target = $region3
  $region8: #{residual_stack.1} parent=0 // loop_exit
    _

</llo_original>
